<compile_context>
chip_gen: v6e
topology: v6e:2x2x1
jax: 0.10.0
libtpu: 0.0.40
codegen_flags: <defaults>
</compile_context>

<pallas_src>
import functools

import jax
import jax.numpy as jnp
from jax.experimental import pallas as pl
from jax.experimental.pallas import tpu as pltpu


def gqn_kernel(x_ref, cv_ref, qv_ref,
               wx_ref, wv_ref, br_ref,
               wgr_ref, wgv_ref, bg_ref,
               xgen_ref, r_ref, *, m):
    rows = x_ref.shape[0]          # B_blk * m   (static)
    bb = rows // m                 # B_blk       (static)

    # ---- representation: phi = relu(x @ Wx + v @ Wv + b_r)          [rows, r_dim]
    # Large K=d matmul in bf16 (cast in-kernel, hidden under the MXU); f32 accumulate.
    phi = jnp.dot(x_ref[...].astype(jnp.bfloat16),
                  wx_ref[...].astype(jnp.bfloat16),
                  preferred_element_type=jnp.float32)
    # Tiny K=k path stays f32 (free, better numerics).
    phi = phi + jnp.dot(cv_ref[...], wv_ref[...], preferred_element_type=jnp.float32)
    phi = jnp.maximum(phi + br_ref[...], 0.0)

    # ---- per-batch mean over the m views: tiny iota-built averaging matmul
    # (avoids an in-kernel [rows, r_dim] -> [bb, m, r_dim] reshape).   [bb, r_dim]
    col = jax.lax.broadcasted_iota(jnp.int32, (bb, rows), 1)
    grp = jax.lax.broadcasted_iota(jnp.int32, (bb, rows), 0)
    in_grp = (col >= grp * m) & (col < grp * m + m)
    avg = jnp.where(in_grp, 1.0 / m, 0.0).astype(jnp.float32)
    r = jnp.dot(avg, phi, preferred_element_type=jnp.float32)
    r_ref[...] = r

    # ---- generator r-path once per batch element                     [bb, d]
    g_r = jnp.dot(r, wgr_ref[...], preferred_element_type=jnp.float32) + bg_ref[...]

    # ---- broadcast g_r to the m views (iota-built 0/1 expansion matmul) and add
    #      the per-view query path, then sigmoid.                      [rows, d]
    rr = jax.lax.broadcasted_iota(jnp.int32, (rows, bb), 0)
    cc = jax.lax.broadcasted_iota(jnp.int32, (rows, bb), 1)
    expand = jnp.where((rr >= cc * m) & (rr < cc * m + m), 1.0, 0.0).astype(jnp.float32)
    logits = (jnp.dot(expand, g_r, preferred_element_type=jnp.float32)
              + jnp.dot(qv_ref[...], wgv_ref[...], preferred_element_type=jnp.float32))
    xgen_ref[...] = jax.nn.sigmoid(logits).astype(xgen_ref.dtype)


def _pick_batch_block(b, m, target_rows=256):
    """Largest divisor of b such that B_blk * m <= target_rows (>=1)."""
    best = 1
    for cand in range(1, b + 1):
        if b % cand == 0 and cand * m <= target_rows:
            best = cand
    return best


def simple_gqn_forward(context_x, context_v, query_v, params, *, out_dtype=jnp.float32):
    """context_x: [b, m, c, h, w], context_v: [b, m, k], query_v: [b, m, k]."""
    b, m, c, h, w = context_x.shape
    k = context_v.shape[-1]
    d = c * h * w
    r_dim = params["Wx"].shape[1]

    # Free, metadata-only reshapes (contiguous) — no extra HBM pass, no dtype cast.
    x2 = context_x.reshape(b * m, d)
    cv2 = context_v.reshape(b * m, k)
    qv2 = query_v.reshape(b * m, k)

    bb = _pick_batch_block(b, m)      # batch elements per grid step
    nb = b // bb                      # grid steps (1 for the toy batch)
    rows = bb * m

    kernel = functools.partial(gqn_kernel, m=m)

    x_gen2, r = pl.pallas_call(
        kernel,
        out_shape=(jax.ShapeDtypeStruct((b * m, d), out_dtype),       # x_gen (flat imgs)
                   jax.ShapeDtypeStruct((b, r_dim), jnp.float32)),    # r
        grid=(nb,),
        in_specs=[
            pl.BlockSpec((rows, d), lambda i: (i, 0)),       # x   (per batch block)
            pl.BlockSpec((rows, k), lambda i: (i, 0)),       # context_v
            pl.BlockSpec((rows, k), lambda i: (i, 0)),       # query_v
            pl.BlockSpec((d, r_dim), lambda i: (0, 0)),      # Wx   (resident)
            pl.BlockSpec((k, r_dim), lambda i: (0, 0)),      # Wv   (resident)
            pl.BlockSpec((1, r_dim), lambda i: (0, 0)),      # b_r  (resident)
            pl.BlockSpec((r_dim, d), lambda i: (0, 0)),      # Wg_r (resident)
            pl.BlockSpec((k, d),     lambda i: (0, 0)),      # Wg_v (resident)
            pl.BlockSpec((1, d),     lambda i: (0, 0)),      # b_g  (resident)
        ],
        out_specs=(
            pl.BlockSpec((rows, d),   lambda i: (i, 0)),     # x_gen
            pl.BlockSpec((bb, r_dim), lambda i: (i, 0)),     # r
        ),
        compiler_params=pltpu.CompilerParams(
            dimension_semantics=("parallel",)),               # shards steps on v7x TCs
    )(x2, cv2, qv2,
      params["Wx"], params["Wv"], params["b_r"],
      params["Wg_r"], params["Wg_v"], params["b_g"])

    return x_gen2.reshape(b, m, c, h, w), r


def init_params(key, c_dim, v_dim, r_dim, h, w):
    d = c_dim * h * w
    k1, k2, k3, k4 = jax.random.split(key, 4)
    scale_x = 1.0 / jnp.sqrt(d)
    scale_v = 1.0 / jnp.sqrt(v_dim)
    scale_r = 1.0 / jnp.sqrt(r_dim + v_dim)
    return {
        "Wx": jax.random.normal(k1, (d, r_dim), jnp.float32) * scale_x,
        "Wv": jax.random.normal(k2, (v_dim, r_dim), jnp.float32) * scale_v,
        "b_r": jnp.zeros((1, r_dim), jnp.float32),
        "Wg_r": jax.random.normal(k3, (r_dim, d), jnp.float32) * scale_r,
        "Wg_v": jax.random.normal(k4, (v_dim, d), jnp.float32) * scale_r,
        "b_g": jnp.zeros((1, d), jnp.float32),
    }


def ref_forward(context_x, context_v, query_v, params):
    """Pure-JAX f32 reference (same assumed Simple* structure)."""
    b, m, c, h, w = context_x.shape
    d = c * h * w
    x = context_x.reshape(b, m, d)
    phi = jax.nn.relu(jnp.einsum("bmd,dr->bmr", x, params["Wx"])
                      + jnp.einsum("bmk,kr->bmr", context_v, params["Wv"])
                      + params["b_r"])
    r = phi.mean(axis=1)                                              # [b, r_dim]
    logits = ((r @ params["Wg_r"])[:, None, :]
              + jnp.einsum("bmk,kd->bmd", query_v, params["Wg_v"])
              + params["b_g"])
    return jax.nn.sigmoid(logits).reshape(b, m, c, h, w), r


if __name__ == "__main__":
    # small shapes: batch=2, views=4, channels=4, 16x16 images, v_dim=8, r_dim=32
    b, m, c, h, w = 2, 4, 4, 16, 16
    v_dim, r_dim = 8, 32

    key = jax.random.PRNGKey(0)
    kx, kv, kq, kp = jax.random.split(key, 4)
    context_x = jax.random.uniform(kx, (b, m, c, h, w), jnp.float32)
    context_v = jax.random.normal(kv, (b, m, v_dim), jnp.float32)
    query_v = jax.random.normal(kq, (b, m, v_dim), jnp.float32)

    params = init_params(kp, c, v_dim, r_dim, h, w)

    x_gen, r = jax.jit(lambda cx, cv, qv: simple_gqn_forward(cx, cv, qv, params))(
        context_x, context_v, query_v)
    jax.block_until_ready((x_gen, r))

    assert x_gen.shape == (b, m, c, h, w), x_gen.shape
    assert r.shape == (b, r_dim), r.shape

    # correctness check vs pure-JAX f32 reference (bf16 rep matmul -> loose tolerance)
    x_ref, r_ref = ref_forward(context_x, context_v, query_v, params)
    assert jnp.allclose(r, r_ref, atol=5e-2, rtol=5e-2), float(jnp.max(jnp.abs(r - r_ref)))
    assert jnp.allclose(x_gen, x_ref, atol=5e-2, rtol=5e-2), float(jnp.max(jnp.abs(x_gen - x_ref)))

    print("KERNEL_OK")
</pallas_src>

<mosaic_0001>
module attributes {stable_mosaic.version = 11 : i64} {
  func.func @gqn_kernel(%arg0: i32, %arg1: memref<8x1024xf32, #tpu.memory_space<vmem>>, %arg2: memref<8x8xf32, #tpu.memory_space<vmem>>, %arg3: memref<8x8xf32, #tpu.memory_space<vmem>>, %arg4: memref<1024x32xf32, #tpu.memory_space<vmem>>, %arg5: memref<8x32xf32, #tpu.memory_space<vmem>>, %arg6: memref<1x32xf32, #tpu.memory_space<vmem>>, %arg7: memref<32x1024xf32, #tpu.memory_space<vmem>>, %arg8: memref<8x1024xf32, #tpu.memory_space<vmem>>, %arg9: memref<1x1024xf32, #tpu.memory_space<vmem>>, %arg10: memref<8x1024xf32, #tpu.memory_space<vmem>>, %arg11: memref<2x32xf32, #tpu.memory_space<vmem>>) attributes {dimension_semantics = [#tpu.dimension_semantics<parallel>], iteration_bounds = array<i64: 1>, scalar_prefetch = 0 : i64, scratch_operands = 0 : i64, tpu.core_type = #tpu.core_type<tc>, window_params = [{transform_indices = @transform_0, window_bounds = array<i64: 8, 1024>}, {transform_indices = @transform_1, window_bounds = array<i64: 8, 8>}, {transform_indices = @transform_2, window_bounds = array<i64: 8, 8>}, {pipeline_mode = #tpu.pipeline_mode<synchronous>, transform_indices = @transform_3, window_bounds = array<i64: 1024, 32>}, {pipeline_mode = #tpu.pipeline_mode<synchronous>, transform_indices = @transform_4, window_bounds = array<i64: 8, 32>}, {pipeline_mode = #tpu.pipeline_mode<synchronous>, transform_indices = @transform_5, window_bounds = array<i64: 1, 32>}, {pipeline_mode = #tpu.pipeline_mode<synchronous>, transform_indices = @transform_6, window_bounds = array<i64: 32, 1024>}, {pipeline_mode = #tpu.pipeline_mode<synchronous>, transform_indices = @transform_7, window_bounds = array<i64: 8, 1024>}, {pipeline_mode = #tpu.pipeline_mode<synchronous>, transform_indices = @transform_8, window_bounds = array<i64: 1, 1024>}, {transform_indices = @transform_9, window_bounds = array<i64: 8, 1024>}, {transform_indices = @transform_10, window_bounds = array<i64: 2, 32>}]} {
    %c0 = arith.constant 0 : index
    %c0_0 = arith.constant 0 : index
    %0 = vector.load %arg1[%c0, %c0_0] : memref<8x1024xf32, #tpu.memory_space<vmem>>, vector<8x1024xf32>
    %1 = arith.truncf %0 : vector<8x1024xf32> to vector<8x1024xbf16>
    %c0_1 = arith.constant 0 : index
    %c0_2 = arith.constant 0 : index
    %2 = vector.load %arg4[%c0_1, %c0_2] : memref<1024x32xf32, #tpu.memory_space<vmem>>, vector<1024x32xf32>
    %3 = arith.truncf %2 : vector<1024x32xf32> to vector<1024x32xbf16>
    %cst = arith.constant dense<0.000000e+00> : vector<8x32xf32>
    %4 = tpu.matmul %1, %3, %cst {dimension_numbers = #tpu.dot_dimension_numbers<[1], [0], [0], [1], [0, 0, 1, 1], [], []>} : vector<8x1024xbf16>, vector<1024x32xbf16>, vector<8x32xf32> -> vector<8x32xf32>
    %c0_3 = arith.constant 0 : index
    %c0_4 = arith.constant 0 : index
    %5 = vector.load %arg2[%c0_3, %c0_4] : memref<8x8xf32, #tpu.memory_space<vmem>>, vector<8x8xf32>
    %c0_5 = arith.constant 0 : index
    %c0_6 = arith.constant 0 : index
    %6 = vector.load %arg5[%c0_5, %c0_6] : memref<8x32xf32, #tpu.memory_space<vmem>>, vector<8x32xf32>
    %cst_7 = arith.constant dense<0.000000e+00> : vector<8x32xf32>
    %7 = tpu.matmul %5, %6, %cst_7 {dimension_numbers = #tpu.dot_dimension_numbers<[1], [0], [0], [1], [0, 0, 1, 1], [], []>} : vector<8x8xf32>, vector<8x32xf32>, vector<8x32xf32> -> vector<8x32xf32>
    %8 = arith.addf %4, %7 : vector<8x32xf32>
    %c0_8 = arith.constant 0 : index
    %c0_9 = arith.constant 0 : index
    %9 = vector.load %arg6[%c0_8, %c0_9] : memref<1x32xf32, #tpu.memory_space<vmem>>, vector<1x32xf32>
    %10 = vector.broadcast %9 : vector<1x32xf32> to vector<8x32xf32>
    %11 = arith.addf %8, %10 : vector<8x32xf32>
    %cst_10 = arith.constant 0.000000e+00 : f32
    %12 = vector.broadcast %cst_10 : f32 to vector<8x32xf32>
    %13 = arith.maximumf %11, %12 : vector<8x32xf32>
    %14 = tpu.iota {dimensions = array<i32: 1>} : vector<2x8xi32>
    %15 = tpu.iota {dimensions = array<i32: 0>} : vector<2x8xi32>
    %c4_i32 = arith.constant 4 : i32
    %16 = vector.broadcast %c4_i32 : i32 to vector<2x8xi32>
    %17 = arith.muli %15, %16 : vector<2x8xi32>
    %18 = arith.cmpi sge, %14, %17 : vector<2x8xi32>
    %c4_i32_11 = arith.constant 4 : i32
    %19 = vector.broadcast %c4_i32_11 : i32 to vector<2x8xi32>
    %20 = arith.muli %15, %19 : vector<2x8xi32>
    %c4_i32_12 = arith.constant 4 : i32
    %21 = vector.broadcast %c4_i32_12 : i32 to vector<2x8xi32>
    %22 = arith.addi %20, %21 : vector<2x8xi32>
    %23 = arith.cmpi slt, %14, %22 : vector<2x8xi32>
    %24 = arith.andi %18, %23 : vector<2x8xi1>
    %cst_13 = arith.constant 2.500000e-01 : f32
    %cst_14 = arith.constant 0.000000e+00 : f32
    %25 = vector.broadcast %cst_13 : f32 to vector<2x8xf32>
    %26 = vector.broadcast %cst_14 : f32 to vector<2x8xf32>
    %27 = arith.select %24, %25, %26 : vector<2x8xi1>, vector<2x8xf32>
    %cst_15 = arith.constant dense<0.000000e+00> : vector<2x32xf32>
    %28 = tpu.matmul %27, %13, %cst_15 {dimension_numbers = #tpu.dot_dimension_numbers<[1], [0], [0], [1], [0, 0, 1, 1], [], []>} : vector<2x8xf32>, vector<8x32xf32>, vector<2x32xf32> -> vector<2x32xf32>
    %c0_16 = arith.constant 0 : index
    %c0_17 = arith.constant 0 : index
    %29 = vector.load %arg11[%c0_16, %c0_17] : memref<2x32xf32, #tpu.memory_space<vmem>>, vector<2x32xf32>
    tpu.vector_store %arg11[%c0_16, %c0_17], %28 {strides = array<i32>} : memref<2x32xf32, #tpu.memory_space<vmem>>, vector<2x32xf32>,
    %c0_18 = arith.constant 0 : index
    %c0_19 = arith.constant 0 : index
    %30 = vector.load %arg7[%c0_18, %c0_19] : memref<32x1024xf32, #tpu.memory_space<vmem>>, vector<32x1024xf32>
    %cst_20 = arith.constant dense<0.000000e+00> : vector<2x1024xf32>
    %31 = tpu.matmul %28, %30, %cst_20 {dimension_numbers = #tpu.dot_dimension_numbers<[1], [0], [0], [1], [0, 0, 1, 1], [], []>} : vector<2x32xf32>, vector<32x1024xf32>, vector<2x1024xf32> -> vector<2x1024xf32>
    %c0_21 = arith.constant 0 : index
    %c0_22 = arith.constant 0 : index
    %32 = vector.load %arg9[%c0_21, %c0_22] : memref<1x1024xf32, #tpu.memory_space<vmem>>, vector<1x1024xf32>
    %33 = vector.broadcast %32 : vector<1x1024xf32> to vector<2x1024xf32>
    %34 = arith.addf %31, %33 : vector<2x1024xf32>
    %35 = tpu.iota {dimensions = array<i32: 0>} : vector<8x2xi32>
    %36 = tpu.iota {dimensions = array<i32: 1>} : vector<8x2xi32>
    %c4_i32_23 = arith.constant 4 : i32
    %37 = vector.broadcast %c4_i32_23 : i32 to vector<8x2xi32>
    %38 = arith.muli %36, %37 : vector<8x2xi32>
    %39 = arith.cmpi sge, %35, %38 : vector<8x2xi32>
    %c4_i32_24 = arith.constant 4 : i32
    %40 = vector.broadcast %c4_i32_24 : i32 to vector<8x2xi32>
    %41 = arith.muli %36, %40 : vector<8x2xi32>
    %c4_i32_25 = arith.constant 4 : i32
    %42 = vector.broadcast %c4_i32_25 : i32 to vector<8x2xi32>
    %43 = arith.addi %41, %42 : vector<8x2xi32>
    %44 = arith.cmpi slt, %35, %43 : vector<8x2xi32>
    %45 = arith.andi %39, %44 : vector<8x2xi1>
    %cst_26 = arith.constant 1.000000e+00 : f32
    %cst_27 = arith.constant 0.000000e+00 : f32
    %46 = vector.broadcast %cst_26 : f32 to vector<8x2xf32>
    %47 = vector.broadcast %cst_27 : f32 to vector<8x2xf32>
    %48 = arith.select %45, %46, %47 : vector<8x2xi1>, vector<8x2xf32>
    %cst_28 = arith.constant dense<0.000000e+00> : vector<8x1024xf32>
    %49 = tpu.matmul %48, %34, %cst_28 {dimension_numbers = #tpu.dot_dimension_numbers<[1], [0], [0], [1], [0, 0, 1, 1], [], []>} : vector<8x2xf32>, vector<2x1024xf32>, vector<8x1024xf32> -> vector<8x1024xf32>
    %c0_29 = arith.constant 0 : index
    %c0_30 = arith.constant 0 : index
    %50 = vector.load %arg3[%c0_29, %c0_30] : memref<8x8xf32, #tpu.memory_space<vmem>>, vector<8x8xf32>
    %c0_31 = arith.constant 0 : index
    %c0_32 = arith.constant 0 : index
    %51 = vector.load %arg8[%c0_31, %c0_32] : memref<8x1024xf32, #tpu.memory_space<vmem>>, vector<8x1024xf32>
    %cst_33 = arith.constant dense<0.000000e+00> : vector<8x1024xf32>
    %52 = tpu.matmul %50, %51, %cst_33 {dimension_numbers = #tpu.dot_dimension_numbers<[1], [0], [0], [1], [0, 0, 1, 1], [], []>} : vector<8x8xf32>, vector<8x1024xf32>, vector<8x1024xf32> -> vector<8x1024xf32>
    %53 = arith.addf %49, %52 : vector<8x1024xf32>
    %54 = arith.negf %53 : vector<8x1024xf32>
    %55 = math.exp %54 : vector<8x1024xf32>
    %cst_34 = arith.constant 1.000000e+00 : f32
    %56 = vector.broadcast %cst_34 : f32 to vector<8x1024xf32>
    %57 = arith.addf %56, %55 : vector<8x1024xf32>
    %58 = arith.divf %56, %57 : vector<8x1024xf32>
    %c0_35 = arith.constant 0 : index
    %c0_36 = arith.constant 0 : index
    %59 = vector.load %arg10[%c0_35, %c0_36] : memref<8x1024xf32, #tpu.memory_space<vmem>>, vector<8x1024xf32>
    tpu.vector_store %arg10[%c0_35, %c0_36], %58 {strides = array<i32>} : memref<8x1024xf32, #tpu.memory_space<vmem>>, vector<8x1024xf32>,
    return
  }
  func.func @transform_0(%arg0: i32) -> (i32, i32) {
    %c0_i32 = arith.constant 0 : i32
    %c0_i32_0 = arith.constant 0 : i32
    return %arg0, %c0_i32 : i32, i32
  }
  func.func @transform_1(%arg0: i32) -> (i32, i32) {
    %c0_i32 = arith.constant 0 : i32
    %c0_i32_0 = arith.constant 0 : i32
    return %arg0, %c0_i32 : i32, i32
  }
  func.func @transform_2(%arg0: i32) -> (i32, i32) {
    %c0_i32 = arith.constant 0 : i32
    %c0_i32_0 = arith.constant 0 : i32
    return %arg0, %c0_i32 : i32, i32
  }
  func.func @transform_3(%arg0: i32) -> (i32, i32) {
    %c0_i32 = arith.constant 0 : i32
    %c0_i32_0 = arith.constant 0 : i32
    %c0_i32_1 = arith.constant 0 : i32
    return %c0_i32, %c0_i32_0 : i32, i32
  }
  func.func @transform_4(%arg0: i32) -> (i32, i32) {
    %c0_i32 = arith.constant 0 : i32
    %c0_i32_0 = arith.constant 0 : i32
    %c0_i32_1 = arith.constant 0 : i32
    return %c0_i32, %c0_i32_0 : i32, i32
  }
  func.func @transform_5(%arg0: i32) -> (i32, i32) {
    %c0_i32 = arith.constant 0 : i32
    %c0_i32_0 = arith.constant 0 : i32
    %c0_i32_1 = arith.constant 0 : i32
    return %c0_i32, %c0_i32_0 : i32, i32
  }
  func.func @transform_6(%arg0: i32) -> (i32, i32) {
    %c0_i32 = arith.constant 0 : i32
    %c0_i32_0 = arith.constant 0 : i32
    %c0_i32_1 = arith.constant 0 : i32
    return %c0_i32, %c0_i32_0 : i32, i32
  }
  func.func @transform_7(%arg0: i32) -> (i32, i32) {
    %c0_i32 = arith.constant 0 : i32
    %c0_i32_0 = arith.constant 0 : i32
    %c0_i32_1 = arith.constant 0 : i32
    return %c0_i32, %c0_i32_0 : i32, i32
  }
  func.func @transform_8(%arg0: i32) -> (i32, i32) {
    %c0_i32 = arith.constant 0 : i32
    %c0_i32_0 = arith.constant 0 : i32
    %c0_i32_1 = arith.constant 0 : i32
    return %c0_i32, %c0_i32_0 : i32, i32
  }
  func.func @transform_9(%arg0: i32) -> (i32, i32) {
    %c0_i32 = arith.constant 0 : i32
    %c0_i32_0 = arith.constant 0 : i32
    return %arg0, %c0_i32 : i32, i32
  }
  func.func @transform_10(%arg0: i32) -> (i32, i32) {
    %c0_i32 = arith.constant 0 : i32
    %c0_i32_0 = arith.constant 0 : i32
    return %arg0, %c0_i32 : i32, i32
  }
}

</mosaic_0001>

<llo_original>
// kernel: _lambda_.1
$region0: #{_lambda_.1}
  #allocation0 [shape = 'u32[]', space=smem, size = 0x4, offset = 0x4, fixed_abs, tag = 'smem constant byte address 0x4 - core index']
  #allocation1 [shape = 'u32[144,128]{1,0:T(1,128)}', space=vmem, size = 0x12000, scoped, tag = 'internal scratch']
  %s0 = inlined_call_operand.vmem [shape: f32[8,1024], index: 0, kind: input, shape index: {}]
  %s1 = inlined_call_operand.vmem [shape: f32[8,8], index: 1, kind: input, shape index: {}]
  %s2 = inlined_call_operand.vmem [shape: f32[8,8], index: 2, kind: input, shape index: {}]
  %s3 = inlined_call_operand.hbm [shape: f32[1024,32], index: 3, kind: input, shape index: {}]
  %s4 = inlined_call_operand.vmem [shape: f32[8,32], index: 4, kind: input, shape index: {}]
  %s5 = inlined_call_operand.vmem [shape: f32[1,32], index: 5, kind: input, shape index: {}]
  %s6 = inlined_call_operand.vmem [shape: f32[32,1024], index: 6, kind: input, shape index: {}]
  %s7 = inlined_call_operand.vmem [shape: f32[8,1024], index: 7, kind: input, shape index: {}]
  %s8 = inlined_call_operand.vmem [shape: f32[1,1024], index: 8, kind: input, shape index: {}]
  %s9 = inlined_call_operand.vmem [shape: f32[8,1024], index: 9, kind: output, shape index: {0}]
  %s10 = inlined_call_operand.hbm [shape: f32[2,32], index: 10, kind: output, shape index: {1}]
  %11 = xla_tuple %s9, %s10
  %s12 = sld [smem:[#allocation0]]
  $region58: #{_lambda_.1} parent=0
    _
  %s14 = ssub.s32 1, %s12
  %s15 = scalar_select 0, %s14, %s12
  $region1: #{_lambda_.1} parent=0
    #allocation2 [shape = 'u8[524288]{0}', space=vmem, size = 0x80000, scoped, tag = 'input window, operand 3, single buffered']
    #allocation3 [shape = 's32[1]{0}', space=sflag, size = 0x4, scoped, tag = 'scoped memory for _lambda_.1']
    #allocation4 [shape = 's32[1]{0}', space=sflag, size = 0x4, scoped, tag = 'scoped memory for _lambda_.1']
    #allocation5 [shape = 'u8[1024]{0}', space=vmem, size = 0x400, scoped, tag = 'output window, operand 1, single buffered']
    %16 = vsyncpa [#allocation3], 0
    %17 = vsyncpa [#allocation4], 0
    // Predicated region
    $region2: #{_lambda_.1} parent=1 // pred_check
      _
    $region3: #{_lambda_.1} parent=1 // pred_check_branch
      %19 = sbr.rel (0) target = $region5
    $region4: #{_lambda_.1} parent=1 // pred_region
      _
    $region5: #{_lambda_.1} parent=1 // pred_fallthru
      _
    // Predicated region
    $region6: #{_lambda_.1} parent=1 // pred_check
      _
    $region7: #{_lambda_.1} parent=1 // pred_check_branch
      %21 = sbr.rel (0) target = $region9
    $region8: #{_lambda_.1} parent=1 // pred_region
      _
    $region9: #{_lambda_.1} parent=1 // pred_fallthru
      _
    // Predicated region
    $region10: #{_lambda_.1} parent=1 // pred_check
      _
    $region11: #{_lambda_.1} parent=1 // pred_check_branch
      %23 = sbr.rel (0) target = $region13
    $region12: #{_lambda_.1} parent=1 // pred_region
      _
    $region13: #{_lambda_.1} parent=1 // pred_fallthru
      _
    // Predicated region
    $region14: #{_lambda_.1} parent=1 // pred_check
      _
    $region15: #{_lambda_.1} parent=1 // pred_check_branch
      %25 = sbr.rel (0) target = $region17
    $region16: #{_lambda_.1} parent=1 // pred_region
      %s27 = ssub.s32 16384, 16384
      %28 = vsyncadd [#allocation3], %s27
      %s29 = sshll.u32 [#allocation2], 4
      %s30 = int_to_ptr.vmem [resolvable:$true] %s29
      %35 = dma.hbm_to_vmem [thread:$0]  %s3, 16384, %s30, [#allocation3], 128, 128, 8
    $region17: #{_lambda_.1} parent=1 // pred_fallthru
      _
    // Predicated region
    $region18: #{_lambda_.1} parent=1 // pred_check
      _
    $region19: #{_lambda_.1} parent=1 // pred_check_branch
      %37 = sbr.rel (0) target = $region21
    $region20: #{_lambda_.1} parent=1 // pred_region
      _
    $region21: #{_lambda_.1} parent=1 // pred_fallthru
      _
    // Predicated region
    $region22: #{_lambda_.1} parent=1 // pred_check
      _
    $region23: #{_lambda_.1} parent=1 // pred_check_branch
      %39 = sbr.rel (0) target = $region25
    $region24: #{_lambda_.1} parent=1 // pred_region
      _
    $region25: #{_lambda_.1} parent=1 // pred_fallthru
      _
    // Predicated region
    $region26: #{_lambda_.1} parent=1 // pred_check
      _
    $region27: #{_lambda_.1} parent=1 // pred_check_branch
      %41 = sbr.rel (0) target = $region29
    $region28: #{_lambda_.1} parent=1 // pred_region
      _
    $region29: #{_lambda_.1} parent=1 // pred_fallthru
      _
    // Predicated region
    $region30: #{_lambda_.1} parent=1 // pred_check
      _
    $region31: #{_lambda_.1} parent=1 // pred_check_branch
      %43 = sbr.rel (0) target = $region33
    $region32: #{_lambda_.1} parent=1 // pred_region
      _
    $region33: #{_lambda_.1} parent=1 // pred_fallthru
      _
    // Predicated region
    $region34: #{_lambda_.1} parent=1 // pred_check
      _
    $region35: #{_lambda_.1} parent=1 // pred_check_branch
      %45 = sbr.rel (0) target = $region37
    $region36: #{_lambda_.1} parent=1 // pred_region
      _
    $region37: #{_lambda_.1} parent=1 // pred_fallthru
      _
    // Predicated region
    $region38: #{_lambda_.1} parent=1 // pred_check
      _
    $region39: #{_lambda_.1} parent=1 // pred_check_branch
      %47 = sbr.rel (0) target = $region41
    $region40: #{_lambda_.1} parent=1 // pred_region
      %48 = dma.done [#allocation3], 16384
    $region41: #{_lambda_.1} parent=1 // pred_fallthru
      _
    %v50 = vld [vmem:[%s0] sm:$0xff]
    %v51 = vld [vmem:[%s0 + $0x8] sm:$0xff]
    %v52 = vld [vmem:[%s0 + $0x10] sm:$0xff]
    %v53 = vld [vmem:[%s0 + $0x18] sm:$0xff]
    %v54 = vld [vmem:[%s0 + $0x20] sm:$0xff]
    %v55 = vld [vmem:[%s0 + $0x28] sm:$0xff]
    %v56 = vld [vmem:[%s0 + $0x30] sm:$0xff]
    %v57 = vld [vmem:[%s0 + $0x38] sm:$0xff]
    %v58 = vpack.c.bf16 %v50, %v50
    %v59 = vpack.c.bf16 %v51, %v51
    %v60 = vpack.c.bf16 %v52, %v52
    %v61 = vpack.c.bf16 %v53, %v53
    %v62 = vpack.c.bf16 %v54, %v54
    %v63 = vpack.c.bf16 %v55, %v55
    %v64 = vpack.c.bf16 %v56, %v56
    %v65 = vpack.c.bf16 %v57, %v57
    %v66 = vld [vmem:[#allocation2] sm:$0xff]
    %v67 = vld [vmem:[#allocation2 + $0x8] sm:$0xff]
    %v68 = vld [vmem:[#allocation2 + $0x10] sm:$0xff]
    %v69 = vld [vmem:[#allocation2 + $0x18] sm:$0xff]
    %v70 = vld [vmem:[#allocation2 + $0x20] sm:$0xff]
    %v71 = vld [vmem:[#allocation2 + $0x28] sm:$0xff]
    %v72 = vld [vmem:[#allocation2 + $0x30] sm:$0xff]
    %v73 = vld [vmem:[#allocation2 + $0x38] sm:$0xff]
    %v74 = vld [vmem:[#allocation2 + $0x40] sm:$0xff]
    %v75 = vld [vmem:[#allocation2 + $0x48] sm:$0xff]
    %v76 = vld [vmem:[#allocation2 + $0x50] sm:$0xff]
    %v77 = vld [vmem:[#allocation2 + $0x58] sm:$0xff]
    %v78 = vld [vmem:[#allocation2 + $0x60] sm:$0xff]
    %v79 = vld [vmem:[#allocation2 + $0x68] sm:$0xff]
    %v80 = vld [vmem:[#allocation2 + $0x70] sm:$0xff]
    %v81 = vld [vmem:[#allocation2 + $0x78] sm:$0xff]
    %v82 = vld [vmem:[#allocation2 + $0x80] sm:$0xff]
    %v83 = vld [vmem:[#allocation2 + $0x88] sm:$0xff]
    %v84 = vld [vmem:[#allocation2 + $0x90] sm:$0xff]
    %v85 = vld [vmem:[#allocation2 + $0x98] sm:$0xff]
    %v86 = vld [vmem:[#allocation2 + $0xa0] sm:$0xff]
    %v87 = vld [vmem:[#allocation2 + $0xa8] sm:$0xff]
    %v88 = vld [vmem:[#allocation2 + $0xb0] sm:$0xff]
    %v89 = vld [vmem:[#allocation2 + $0xb8] sm:$0xff]
    %v90 = vld [vmem:[#allocation2 + $0xc0] sm:$0xff]
    %v91 = vld [vmem:[#allocation2 + $0xc8] sm:$0xff]
    %v92 = vld [vmem:[#allocation2 + $0xd0] sm:$0xff]
    %v93 = vld [vmem:[#allocation2 + $0xd8] sm:$0xff]
    %v94 = vld [vmem:[#allocation2 + $0xe0] sm:$0xff]
    %v95 = vld [vmem:[#allocation2 + $0xe8] sm:$0xff]
    %v96 = vld [vmem:[#allocation2 + $0xf0] sm:$0xff]
    %v97 = vld [vmem:[#allocation2 + $0xf8] sm:$0xff]
    %v98 = vld [vmem:[#allocation2 + $0x100] sm:$0xff]
    %v99 = vld [vmem:[#allocation2 + $0x108] sm:$0xff]
    %v100 = vld [vmem:[#allocation2 + $0x110] sm:$0xff]
    %v101 = vld [vmem:[#allocation2 + $0x118] sm:$0xff]
    %v102 = vld [vmem:[#allocation2 + $0x120] sm:$0xff]
    %v103 = vld [vmem:[#allocation2 + $0x128] sm:$0xff]
    %v104 = vld [vmem:[#allocation2 + $0x130] sm:$0xff]
    %v105 = vld [vmem:[#allocation2 + $0x138] sm:$0xff]
    %v106 = vld [vmem:[#allocation2 + $0x140] sm:$0xff]
    %v107 = vld [vmem:[#allocation2 + $0x148] sm:$0xff]
    %v108 = vld [vmem:[#allocation2 + $0x150] sm:$0xff]
    %v109 = vld [vmem:[#allocation2 + $0x158] sm:$0xff]
    %v110 = vld [vmem:[#allocation2 + $0x160] sm:$0xff]
    %v111 = vld [vmem:[#allocation2 + $0x168] sm:$0xff]
    %v112 = vld [vmem:[#allocation2 + $0x170] sm:$0xff]
    %v113 = vld [vmem:[#allocation2 + $0x178] sm:$0xff]
    %v114 = vld [vmem:[#allocation2 + $0x180] sm:$0xff]
    %v115 = vld [vmem:[#allocation2 + $0x188] sm:$0xff]
    %v116 = vld [vmem:[#allocation2 + $0x190] sm:$0xff]
    %v117 = vld [vmem:[#allocation2 + $0x198] sm:$0xff]
    %v118 = vld [vmem:[#allocation2 + $0x1a0] sm:$0xff]
    %v119 = vld [vmem:[#allocation2 + $0x1a8] sm:$0xff]
    %v120 = vld [vmem:[#allocation2 + $0x1b0] sm:$0xff]
    %v121 = vld [vmem:[#allocation2 + $0x1b8] sm:$0xff]
    %v122 = vld [vmem:[#allocation2 + $0x1c0] sm:$0xff]
    %v123 = vld [vmem:[#allocation2 + $0x1c8] sm:$0xff]
    %v124 = vld [vmem:[#allocation2 + $0x1d0] sm:$0xff]
    %v125 = vld [vmem:[#allocation2 + $0x1d8] sm:$0xff]
    %v126 = vld [vmem:[#allocation2 + $0x1e0] sm:$0xff]
    %v127 = vld [vmem:[#allocation2 + $0x1e8] sm:$0xff]
    %v128 = vld [vmem:[#allocation2 + $0x1f0] sm:$0xff]
    %v129 = vld [vmem:[#allocation2 + $0x1f8] sm:$0xff]
    %v130 = vld [vmem:[#allocation2 + $0x200] sm:$0xff]
    %v131 = vld [vmem:[#allocation2 + $0x208] sm:$0xff]
    %v132 = vld [vmem:[#allocation2 + $0x210] sm:$0xff]
    %v133 = vld [vmem:[#allocation2 + $0x218] sm:$0xff]
    %v134 = vld [vmem:[#allocation2 + $0x220] sm:$0xff]
    %v135 = vld [vmem:[#allocation2 + $0x228] sm:$0xff]
    %v136 = vld [vmem:[#allocation2 + $0x230] sm:$0xff]
    %v137 = vld [vmem:[#allocation2 + $0x238] sm:$0xff]
    %v138 = vld [vmem:[#allocation2 + $0x240] sm:$0xff]
    %v139 = vld [vmem:[#allocation2 + $0x248] sm:$0xff]
    %v140 = vld [vmem:[#allocation2 + $0x250] sm:$0xff]
    %v141 = vld [vmem:[#allocation2 + $0x258] sm:$0xff]
    %v142 = vld [vmem:[#allocation2 + $0x260] sm:$0xff]
    %v143 = vld [vmem:[#allocation2 + $0x268] sm:$0xff]
    %v144 = vld [vmem:[#allocation2 + $0x270] sm:$0xff]
    %v145 = vld [vmem:[#allocation2 + $0x278] sm:$0xff]
    %v146 = vld [vmem:[#allocation2 + $0x280] sm:$0xff]
    %v147 = vld [vmem:[#allocation2 + $0x288] sm:$0xff]
    %v148 = vld [vmem:[#allocation2 + $0x290] sm:$0xff]
    %v149 = vld [vmem:[#allocation2 + $0x298] sm:$0xff]
    %v150 = vld [vmem:[#allocation2 + $0x2a0] sm:$0xff]
    %v151 = vld [vmem:[#allocation2 + $0x2a8] sm:$0xff]
    %v152 = vld [vmem:[#allocation2 + $0x2b0] sm:$0xff]
    %v153 = vld [vmem:[#allocation2 + $0x2b8] sm:$0xff]
    %v154 = vld [vmem:[#allocation2 + $0x2c0] sm:$0xff]
    %v155 = vld [vmem:[#allocation2 + $0x2c8] sm:$0xff]
    %v156 = vld [vmem:[#allocation2 + $0x2d0] sm:$0xff]
    %v157 = vld [vmem:[#allocation2 + $0x2d8] sm:$0xff]
    %v158 = vld [vmem:[#allocation2 + $0x2e0] sm:$0xff]
    %v159 = vld [vmem:[#allocation2 + $0x2e8] sm:$0xff]
    %v160 = vld [vmem:[#allocation2 + $0x2f0] sm:$0xff]
    %v161 = vld [vmem:[#allocation2 + $0x2f8] sm:$0xff]
    %v162 = vld [vmem:[#allocation2 + $0x300] sm:$0xff]
    %v163 = vld [vmem:[#allocation2 + $0x308] sm:$0xff]
    %v164 = vld [vmem:[#allocation2 + $0x310] sm:$0xff]
    %v165 = vld [vmem:[#allocation2 + $0x318] sm:$0xff]
    %v166 = vld [vmem:[#allocation2 + $0x320] sm:$0xff]
    %v167 = vld [vmem:[#allocation2 + $0x328] sm:$0xff]
    %v168 = vld [vmem:[#allocation2 + $0x330] sm:$0xff]
    %v169 = vld [vmem:[#allocation2 + $0x338] sm:$0xff]
    %v170 = vld [vmem:[#allocation2 + $0x340] sm:$0xff]
    %v171 = vld [vmem:[#allocation2 + $0x348] sm:$0xff]
    %v172 = vld [vmem:[#allocation2 + $0x350] sm:$0xff]
    %v173 = vld [vmem:[#allocation2 + $0x358] sm:$0xff]
    %v174 = vld [vmem:[#allocation2 + $0x360] sm:$0xff]
    %v175 = vld [vmem:[#allocation2 + $0x368] sm:$0xff]
    %v176 = vld [vmem:[#allocation2 + $0x370] sm:$0xff]
    %v177 = vld [vmem:[#allocation2 + $0x378] sm:$0xff]
    %v178 = vld [vmem:[#allocation2 + $0x380] sm:$0xff]
    %v179 = vld [vmem:[#allocation2 + $0x388] sm:$0xff]
    %v180 = vld [vmem:[#allocation2 + $0x390] sm:$0xff]
    %v181 = vld [vmem:[#allocation2 + $0x398] sm:$0xff]
    %v182 = vld [vmem:[#allocation2 + $0x3a0] sm:$0xff]
    %v183 = vld [vmem:[#allocation2 + $0x3a8] sm:$0xff]
    %v184 = vld [vmem:[#allocation2 + $0x3b0] sm:$0xff]
    %v185 = vld [vmem:[#allocation2 + $0x3b8] sm:$0xff]
    %v186 = vld [vmem:[#allocation2 + $0x3c0] sm:$0xff]
    %v187 = vld [vmem:[#allocation2 + $0x3c8] sm:$0xff]
    %v188 = vld [vmem:[#allocation2 + $0x3d0] sm:$0xff]
    %v189 = vld [vmem:[#allocation2 + $0x3d8] sm:$0xff]
    %v190 = vld [vmem:[#allocation2 + $0x3e0] sm:$0xff]
    %v191 = vld [vmem:[#allocation2 + $0x3e8] sm:$0xff]
    %v192 = vld [vmem:[#allocation2 + $0x3f0] sm:$0xff]
    %v193 = vld [vmem:[#allocation2 + $0x3f8] sm:$0xff]
    %v194 = vpack.c.bf16 %v67, %v66
    %v195 = vpack.c.bf16 %v69, %v68
    %v196 = vpack.c.bf16 %v71, %v70
    %v197 = vpack.c.bf16 %v73, %v72
    %v198 = vpack.c.bf16 %v75, %v74
    %v199 = vpack.c.bf16 %v77, %v76
    %v200 = vpack.c.bf16 %v79, %v78
    %v201 = vpack.c.bf16 %v81, %v80
    %v202 = vpack.c.bf16 %v83, %v82
    %v203 = vpack.c.bf16 %v85, %v84
    %v204 = vpack.c.bf16 %v87, %v86
    %v205 = vpack.c.bf16 %v89, %v88
    %v206 = vpack.c.bf16 %v91, %v90
    %v207 = vpack.c.bf16 %v93, %v92
    %v208 = vpack.c.bf16 %v95, %v94
    %v209 = vpack.c.bf16 %v97, %v96
    %v210 = vpack.c.bf16 %v99, %v98
    %v211 = vpack.c.bf16 %v101, %v100
    %v212 = vpack.c.bf16 %v103, %v102
    %v213 = vpack.c.bf16 %v105, %v104
    %v214 = vpack.c.bf16 %v107, %v106
    %v215 = vpack.c.bf16 %v109, %v108
    %v216 = vpack.c.bf16 %v111, %v110
    %v217 = vpack.c.bf16 %v113, %v112
    %v218 = vpack.c.bf16 %v115, %v114
    %v219 = vpack.c.bf16 %v117, %v116
    %v220 = vpack.c.bf16 %v119, %v118
    %v221 = vpack.c.bf16 %v121, %v120
    %v222 = vpack.c.bf16 %v123, %v122
    %v223 = vpack.c.bf16 %v125, %v124
    %v224 = vpack.c.bf16 %v127, %v126
    %v225 = vpack.c.bf16 %v129, %v128
    %v226 = vpack.c.bf16 %v131, %v130
    %v227 = vpack.c.bf16 %v133, %v132
    %v228 = vpack.c.bf16 %v135, %v134
    %v229 = vpack.c.bf16 %v137, %v136
    %v230 = vpack.c.bf16 %v139, %v138
    %v231 = vpack.c.bf16 %v141, %v140
    %v232 = vpack.c.bf16 %v143, %v142
    %v233 = vpack.c.bf16 %v145, %v144
    %v234 = vpack.c.bf16 %v147, %v146
    %v235 = vpack.c.bf16 %v149, %v148
    %v236 = vpack.c.bf16 %v151, %v150
    %v237 = vpack.c.bf16 %v153, %v152
    %v238 = vpack.c.bf16 %v155, %v154
    %v239 = vpack.c.bf16 %v157, %v156
    %v240 = vpack.c.bf16 %v159, %v158
    %v241 = vpack.c.bf16 %v161, %v160
    %v242 = vpack.c.bf16 %v163, %v162
    %v243 = vpack.c.bf16 %v165, %v164
    %v244 = vpack.c.bf16 %v167, %v166
    %v245 = vpack.c.bf16 %v169, %v168
    %v246 = vpack.c.bf16 %v171, %v170
    %v247 = vpack.c.bf16 %v173, %v172
    %v248 = vpack.c.bf16 %v175, %v174
    %v249 = vpack.c.bf16 %v177, %v176
    %v250 = vpack.c.bf16 %v179, %v178
    %v251 = vpack.c.bf16 %v181, %v180
    %v252 = vpack.c.bf16 %v183, %v182
    %v253 = vpack.c.bf16 %v185, %v184
    %v254 = vpack.c.bf16 %v187, %v186
    %v255 = vpack.c.bf16 %v189, %v188
    %v256 = vpack.c.bf16 %v191, %v190
    %v257 = vpack.c.bf16 %v193, %v192
    %v258 = vld [vmem:[%s1] sm:$0xff]
    %v259 = vld [vmem:[%s4] sm:$0xff]
    %vm260 = vcmask 64512
    %v262 = vsel %vm260, %v258, 0
    %264 = vmatprep.subr.mxu0 0.0
    %265 = vmatpush1.msra.mxu0 0.0
    %266 = vmatprep.subr.mxu0 0.0
    %267 = vmatpush1.msra.mxu0 0.0
    %268 = vmatprep.subr.mxu0 0.0
    %269 = vmatpush1.msra.mxu0 0.0
    %270 = vmatprep.subr.mxu0 0.0
    %271 = vmatpush1.msra.mxu0 0.0
    %272 = vmatprep.subr.mxu0 0.0
    %273 = vmatpush1.msra.mxu0 0.0
    %274 = vmatprep.subr.mxu0 0.0
    %275 = vmatpush1.msra.mxu0 0.0
    %276 = vmatprep.subr.mxu0 0.0
    %277 = vmatpush1.msra.mxu0 0.0
    %278 = vmatprep.subr.mxu0 0.0
    %279 = vmatpush1.msra.mxu0 0.0
    %280 = vmatprep.subr.mxu0 0.0
    %281 = vmatpush1.msra.mxu0 0.0
    %282 = vmatprep.subr.mxu0 0.0
    %283 = vmatpush1.msra.mxu0 0.0
    %284 = vmatprep.subr.mxu0 0.0
    %285 = vmatpush1.msra.mxu0 0.0
    %286 = vmatprep.subr.mxu0 0.0
    %287 = vmatpush1.msra.mxu0 0.0
    %288 = vmatprep.subr.mxu0 0.0
    %289 = vmatpush1.msra.mxu0 0.0
    %290 = vmatprep.subr.mxu0 0.0
    %291 = vmatpush1.msra.mxu0 0.0
    %292 = vmatprep.subr.mxu0 0.0
    %293 = vmatpush1.msra.mxu0 0.0
    %294 = vmatprep.subr.mxu0 0.0
    %295 = vmatpush1.msra.mxu0 %v259
    %296 = vmatprep.subr.mxu0 0.0
    %297 = vmatpush2.msra.mxu0 0.0
    %298 = vmatprep.subr.mxu0 0.0
    %299 = vmatpush2.msra.mxu0 0.0
    %300 = vmatprep.subr.mxu0 0.0
    %301 = vmatpush2.msra.mxu0 0.0
    %302 = vmatprep.subr.mxu0 0.0
    %303 = vmatpush2.msra.mxu0 0.0
    %304 = vmatprep.subr.mxu0 0.0
    %305 = vmatpush2.msra.mxu0 0.0
    %306 = vmatprep.subr.mxu0 0.0
    %307 = vmatpush2.msra.mxu0 0.0
    %308 = vmatprep.subr.mxu0 0.0
    %309 = vmatpush2.msra.mxu0 0.0
    %310 = vmatprep.subr.mxu0 0.0
    %311 = vmatpush2.msra.mxu0 0.0
    %312 = vmatprep.subr.mxu0 0.0
    %313 = vmatpush2.msra.mxu0 0.0
    %314 = vmatprep.subr.mxu0 0.0
    %315 = vmatpush2.msra.mxu0 0.0
    %316 = vmatprep.subr.mxu0 0.0
    %317 = vmatpush2.msra.mxu0 0.0
    %318 = vmatprep.subr.mxu0 0.0
    %319 = vmatpush2.msra.mxu0 0.0
    %320 = vmatprep.subr.mxu0 0.0
    %321 = vmatpush2.msra.mxu0 0.0
    %322 = vmatprep.subr.mxu0 0.0
    %323 = vmatpush2.msra.mxu0 0.0
    %324 = vmatprep.subr.mxu0 0.0
    %325 = vmatpush2.msra.mxu0 0.0
    %326 = vmatprep.subr.mxu0 0.0
    %327 = vmatpush2.msra.mxu0 0.0
    %328 = vmatprep.mubr.f32.mxu0 0.0
    %329 = vmatmul.mubr.f32.gmra.mxu0 %v262
    %v330 = vpop.f32.mrf.mxu0
    %v331 = vadd.f32 0.0, %v330
    %v332 = vpop.f32.mrf.mxu0
    %333 = vdwg.mxu0
    %334 = vmatprep.subr.bf16.mxu0 0
    %335 = vmatpush1.bf16.msra.mxu0 %v201
    %336 = vmatprep.subr.bf16.mxu0 0
    %337 = vmatpush1.bf16.msra.mxu0 %v200
    %338 = vmatprep.subr.bf16.mxu0 0
    %339 = vmatpush1.bf16.msra.mxu0 %v199
    %340 = vmatprep.subr.bf16.mxu0 0
    %341 = vmatpush1.bf16.msra.mxu0 %v198
    %342 = vmatprep.subr.bf16.mxu0 0
    %343 = vmatpush1.bf16.msra.mxu0 %v197
    %344 = vmatprep.subr.bf16.mxu0 0
    %345 = vmatpush1.bf16.msra.mxu0 %v196
    %346 = vmatprep.subr.bf16.mxu0 0
    %347 = vmatpush1.bf16.msra.mxu0 %v195
    %348 = vmatprep.subr.bf16.mxu0 0
    %349 = vmatpush1.bf16.msra.mxu0 %v194
    %350 = vmatprep.subr.bf16.mxu0 0
    %351 = vmatpush2.bf16.msra.mxu0 %v209
    %352 = vmatprep.subr.bf16.mxu0 0
    %353 = vmatpush2.bf16.msra.mxu0 %v208
    %354 = vmatprep.subr.bf16.mxu0 0
    %355 = vmatpush2.bf16.msra.mxu0 %v207
    %356 = vmatprep.subr.bf16.mxu0 0
    %357 = vmatpush2.bf16.msra.mxu0 %v206
    %358 = vmatprep.subr.bf16.mxu0 0
    %359 = vmatpush2.bf16.msra.mxu0 %v205
    %360 = vmatprep.subr.bf16.mxu0 0
    %361 = vmatpush2.bf16.msra.mxu0 %v204
    %362 = vmatprep.subr.bf16.mxu0 0
    %363 = vmatpush2.bf16.msra.mxu0 %v203
    %364 = vmatprep.subr.bf16.mxu0 0
    %365 = vmatpush2.bf16.msra.mxu0 %v202
    %366 = vmatprep.mubr.bf16.mxu0 %v59
    %367 = vmatmul.mubr.bf16.gmra.mxu0 %v58
    %v368 = vpop.f32.mrf.mxu0
    %v369 = vadd.f32 %v331, %v368
    %v370 = vpop.f32.mrf.mxu0
    %v371 = vpop.f32.mrf.mxu0
    %v372 = vpop.f32.mrf.mxu0
    %373 = vdwg.mxu0
    %374 = vmatprep.subr.bf16.mxu0 0
    %375 = vmatpush1.bf16.msra.mxu0 %v217
    %376 = vmatprep.subr.bf16.mxu0 0
    %377 = vmatpush1.bf16.msra.mxu0 %v216
    %378 = vmatprep.subr.bf16.mxu0 0
    %379 = vmatpush1.bf16.msra.mxu0 %v215
    %380 = vmatprep.subr.bf16.mxu0 0
    %381 = vmatpush1.bf16.msra.mxu0 %v214
    %382 = vmatprep.subr.bf16.mxu0 0
    %383 = vmatpush1.bf16.msra.mxu0 %v213
    %384 = vmatprep.subr.bf16.mxu0 0
    %385 = vmatpush1.bf16.msra.mxu0 %v212
    %386 = vmatprep.subr.bf16.mxu0 0
    %387 = vmatpush1.bf16.msra.mxu0 %v211
    %388 = vmatprep.subr.bf16.mxu0 0
    %389 = vmatpush1.bf16.msra.mxu0 %v210
    %390 = vmatprep.subr.bf16.mxu0 0
    %391 = vmatpush2.bf16.msra.mxu0 %v225
    %392 = vmatprep.subr.bf16.mxu0 0
    %393 = vmatpush2.bf16.msra.mxu0 %v224
    %394 = vmatprep.subr.bf16.mxu0 0
    %395 = vmatpush2.bf16.msra.mxu0 %v223
    %396 = vmatprep.subr.bf16.mxu0 0
    %397 = vmatpush2.bf16.msra.mxu0 %v222
    %398 = vmatprep.subr.bf16.mxu0 0
    %399 = vmatpush2.bf16.msra.mxu0 %v221
    %400 = vmatprep.subr.bf16.mxu0 0
    %401 = vmatpush2.bf16.msra.mxu0 %v220
    %402 = vmatprep.subr.bf16.mxu0 0
    %403 = vmatpush2.bf16.msra.mxu0 %v219
    %404 = vmatprep.subr.bf16.mxu0 0
    %405 = vmatpush2.bf16.msra.mxu0 %v218
    %406 = vmatprep.mubr.bf16.mxu0 %v61
    %407 = vmatmul.mubr.bf16.gmra.mxu0 %v60
    %v408 = vpop.f32.mrf.mxu0
    %v409 = vadd.f32 %v369, %v408
    %v410 = vpop.f32.mrf.mxu0
    %v411 = vpop.f32.mrf.mxu0
    %v412 = vpop.f32.mrf.mxu0
    %413 = vdwg.mxu0
    %414 = vmatprep.subr.bf16.mxu0 0
    %415 = vmatpush1.bf16.msra.mxu0 %v233
    %416 = vmatprep.subr.bf16.mxu0 0
    %417 = vmatpush1.bf16.msra.mxu0 %v232
    %418 = vmatprep.subr.bf16.mxu0 0
    %419 = vmatpush1.bf16.msra.mxu0 %v231
    %420 = vmatprep.subr.bf16.mxu0 0
    %421 = vmatpush1.bf16.msra.mxu0 %v230
    %422 = vmatprep.subr.bf16.mxu0 0
    %423 = vmatpush1.bf16.msra.mxu0 %v229
    %424 = vmatprep.subr.bf16.mxu0 0
    %425 = vmatpush1.bf16.msra.mxu0 %v228
    %426 = vmatprep.subr.bf16.mxu0 0
    %427 = vmatpush1.bf16.msra.mxu0 %v227
    %428 = vmatprep.subr.bf16.mxu0 0
    %429 = vmatpush1.bf16.msra.mxu0 %v226
    %430 = vmatprep.subr.bf16.mxu0 0
    %431 = vmatpush2.bf16.msra.mxu0 %v241
    %432 = vmatprep.subr.bf16.mxu0 0
    %433 = vmatpush2.bf16.msra.mxu0 %v240
    %434 = vmatprep.subr.bf16.mxu0 0
    %435 = vmatpush2.bf16.msra.mxu0 %v239
    %436 = vmatprep.subr.bf16.mxu0 0
    %437 = vmatpush2.bf16.msra.mxu0 %v238
    %438 = vmatprep.subr.bf16.mxu0 0
    %439 = vmatpush2.bf16.msra.mxu0 %v237
    %440 = vmatprep.subr.bf16.mxu0 0
    %441 = vmatpush2.bf16.msra.mxu0 %v236
    %442 = vmatprep.subr.bf16.mxu0 0
    %443 = vmatpush2.bf16.msra.mxu0 %v235
    %444 = vmatprep.subr.bf16.mxu0 0
    %445 = vmatpush2.bf16.msra.mxu0 %v234
    %446 = vmatprep.mubr.bf16.mxu0 %v63
    %447 = vmatmul.mubr.bf16.gmra.mxu0 %v62
    %v448 = vpop.f32.mrf.mxu0
    %v449 = vadd.f32 %v409, %v448
    %v450 = vpop.f32.mrf.mxu0
    %v451 = vpop.f32.mrf.mxu0
    %v452 = vpop.f32.mrf.mxu0
    %453 = vdwg.mxu0
    %454 = vmatprep.subr.bf16.mxu0 0
    %455 = vmatpush1.bf16.msra.mxu0 %v249
    %456 = vmatprep.subr.bf16.mxu0 0
    %457 = vmatpush1.bf16.msra.mxu0 %v248
    %458 = vmatprep.subr.bf16.mxu0 0
    %459 = vmatpush1.bf16.msra.mxu0 %v247
    %460 = vmatprep.subr.bf16.mxu0 0
    %461 = vmatpush1.bf16.msra.mxu0 %v246
    %462 = vmatprep.subr.bf16.mxu0 0
    %463 = vmatpush1.bf16.msra.mxu0 %v245
    %464 = vmatprep.subr.bf16.mxu0 0
    %465 = vmatpush1.bf16.msra.mxu0 %v244
    %466 = vmatprep.subr.bf16.mxu0 0
    %467 = vmatpush1.bf16.msra.mxu0 %v243
    %468 = vmatprep.subr.bf16.mxu0 0
    %469 = vmatpush1.bf16.msra.mxu0 %v242
    %470 = vmatprep.subr.bf16.mxu0 0
    %471 = vmatpush2.bf16.msra.mxu0 %v257
    %472 = vmatprep.subr.bf16.mxu0 0
    %473 = vmatpush2.bf16.msra.mxu0 %v256
    %474 = vmatprep.subr.bf16.mxu0 0
    %475 = vmatpush2.bf16.msra.mxu0 %v255
    %476 = vmatprep.subr.bf16.mxu0 0
    %477 = vmatpush2.bf16.msra.mxu0 %v254
    %478 = vmatprep.subr.bf16.mxu0 0
    %479 = vmatpush2.bf16.msra.mxu0 %v253
    %480 = vmatprep.subr.bf16.mxu0 0
    %481 = vmatpush2.bf16.msra.mxu0 %v252
    %482 = vmatprep.subr.bf16.mxu0 0
    %483 = vmatpush2.bf16.msra.mxu0 %v251
    %484 = vmatprep.subr.bf16.mxu0 0
    %485 = vmatpush2.bf16.msra.mxu0 %v250
    %486 = vmatprep.mubr.bf16.mxu0 %v65
    %487 = vmatmul.mubr.bf16.gmra.mxu0 %v64
    %v488 = vpop.f32.mrf.mxu0
    %v489 = vadd.f32 %v449, %v488
    %v490 = vpop.f32.mrf.mxu0
    %v491 = vpop.f32.mrf.mxu0
    %v492 = vpop.f32.mrf.mxu0
    %493 = vdwg.mxu0
    %v494 = vld [vmem:[%s5] sm:$0x1]
    %v496 = vlaneseq
    %v497 = vshrl.u32 %v496, 7
    %v498 = vsub.s32 0, %v497
    %v499 = vrot.slane %v494, %v498
    %v501 = vadd.f32 %v489, %v499
    %v502 = vmax.f32 %v501, 0.0
    %v503 = vlaneseq
    %v504 = vand.u32 %v503, 127
    %v505 = vlaneseq
    %v506 = vshrl.u32 %v505, 7
    %v507 = vmul.u32 %v506, 4
    %vm508 = vcmp.ge.s32.totalorder %v504, %v507
    %v509 = vadd.s32 %v507, 4
    %vm510 = vcmp.lt.s32.totalorder %v504, %v509
    %vm511 = vmand %vm508, %vm510
    %v512 = vsel %vm511, 0.25, 0.0
    %v514 = vsel %vm260, %v512, 0
    %516 = vmatprep.subr.mxu0 0.0
    %517 = vmatpush1.msra.mxu0 0.0
    %518 = vmatprep.subr.mxu0 0.0
    %519 = vmatpush1.msra.mxu0 0.0
    %520 = vmatprep.subr.mxu0 0.0
    %521 = vmatpush1.msra.mxu0 0.0
    %522 = vmatprep.subr.mxu0 0.0
    %523 = vmatpush1.msra.mxu0 0.0
    %524 = vmatprep.subr.mxu0 0.0
    %525 = vmatpush1.msra.mxu0 0.0
    %526 = vmatprep.subr.mxu0 0.0
    %527 = vmatpush1.msra.mxu0 0.0
    %528 = vmatprep.subr.mxu0 0.0
    %529 = vmatpush1.msra.mxu0 0.0
    %530 = vmatprep.subr.mxu0 0.0
    %531 = vmatpush1.msra.mxu0 0.0
    %532 = vmatprep.subr.mxu0 0.0
    %533 = vmatpush1.msra.mxu0 0.0
    %534 = vmatprep.subr.mxu0 0.0
    %535 = vmatpush1.msra.mxu0 0.0
    %536 = vmatprep.subr.mxu0 0.0
    %537 = vmatpush1.msra.mxu0 0.0
    %538 = vmatprep.subr.mxu0 0.0
    %539 = vmatpush1.msra.mxu0 0.0
    %540 = vmatprep.subr.mxu0 0.0
    %541 = vmatpush1.msra.mxu0 0.0
    %542 = vmatprep.subr.mxu0 0.0
    %543 = vmatpush1.msra.mxu0 0.0
    %544 = vmatprep.subr.mxu0 0.0
    %545 = vmatpush1.msra.mxu0 0.0
    %546 = vmatprep.subr.mxu0 0.0
    %547 = vmatpush1.msra.mxu0 %v502
    %548 = vmatprep.subr.mxu0 0.0
    %549 = vmatpush2.msra.mxu0 0.0
    %550 = vmatprep.subr.mxu0 0.0
    %551 = vmatpush2.msra.mxu0 0.0
    %552 = vmatprep.subr.mxu0 0.0
    %553 = vmatpush2.msra.mxu0 0.0
    %554 = vmatprep.subr.mxu0 0.0
    %555 = vmatpush2.msra.mxu0 0.0
    %556 = vmatprep.subr.mxu0 0.0
    %557 = vmatpush2.msra.mxu0 0.0
    %558 = vmatprep.subr.mxu0 0.0
    %559 = vmatpush2.msra.mxu0 0.0
    %560 = vmatprep.subr.mxu0 0.0
    %561 = vmatpush2.msra.mxu0 0.0
    %562 = vmatprep.subr.mxu0 0.0
    %563 = vmatpush2.msra.mxu0 0.0
    %564 = vmatprep.subr.mxu0 0.0
    %565 = vmatpush2.msra.mxu0 0.0
    %566 = vmatprep.subr.mxu0 0.0
    %567 = vmatpush2.msra.mxu0 0.0
    %568 = vmatprep.subr.mxu0 0.0
    %569 = vmatpush2.msra.mxu0 0.0
    %570 = vmatprep.subr.mxu0 0.0
    %571 = vmatpush2.msra.mxu0 0.0
    %572 = vmatprep.subr.mxu0 0.0
    %573 = vmatpush2.msra.mxu0 0.0
    %574 = vmatprep.subr.mxu0 0.0
    %575 = vmatpush2.msra.mxu0 0.0
    %576 = vmatprep.subr.mxu0 0.0
    %577 = vmatpush2.msra.mxu0 0.0
    %578 = vmatprep.subr.mxu0 0.0
    %579 = vmatpush2.msra.mxu0 0.0
    %580 = vmatprep.mubr.f32.mxu0 0.0
    %581 = vmatmul.mubr.f32.gmra.mxu0 %v514
    %v582 = vpop.f32.mrf.mxu0
    %v583 = vadd.f32 0.0, %v582
    %v584 = vpop.f32.mrf.mxu0
    %585 = vdwg.mxu0
    %vm586 = vcmask 254976
    %587 = vst.msk [vmem:[#allocation5] sm:$0x3] %vm586, %v583
    %v588 = vld [vmem:[%s6] sm:$0xff]
    %v589 = vld [vmem:[%s6 + $0x8] sm:$0xff]
    %v590 = vld [vmem:[%s6 + $0x10] sm:$0xff]
    %v591 = vld [vmem:[%s6 + $0x18] sm:$0xff]
    %v592 = vld [vmem:[%s6 + $0x20] sm:$0xff]
    %v593 = vld [vmem:[%s6 + $0x28] sm:$0xff]
    %v594 = vld [vmem:[%s6 + $0x30] sm:$0xff]
    %v595 = vld [vmem:[%s6 + $0x38] sm:$0xff]
    %v596 = vld [vmem:[%s6 + $0x40] sm:$0xff]
    %v597 = vld [vmem:[%s6 + $0x48] sm:$0xff]
    %v598 = vld [vmem:[%s6 + $0x50] sm:$0xff]
    %v599 = vld [vmem:[%s6 + $0x58] sm:$0xff]
    %v600 = vld [vmem:[%s6 + $0x60] sm:$0xff]
    %v601 = vld [vmem:[%s6 + $0x68] sm:$0xff]
    %v602 = vld [vmem:[%s6 + $0x70] sm:$0xff]
    %v603 = vld [vmem:[%s6 + $0x78] sm:$0xff]
    %v604 = vld [vmem:[%s6 + $0x80] sm:$0xff]
    %v605 = vld [vmem:[%s6 + $0x88] sm:$0xff]
    %v606 = vld [vmem:[%s6 + $0x90] sm:$0xff]
    %v607 = vld [vmem:[%s6 + $0x98] sm:$0xff]
    %v608 = vld [vmem:[%s6 + $0xa0] sm:$0xff]
    %v609 = vld [vmem:[%s6 + $0xa8] sm:$0xff]
    %v610 = vld [vmem:[%s6 + $0xb0] sm:$0xff]
    %v611 = vld [vmem:[%s6 + $0xb8] sm:$0xff]
    %v612 = vld [vmem:[%s6 + $0xc0] sm:$0xff]
    %v613 = vld [vmem:[%s6 + $0xc8] sm:$0xff]
    %v614 = vld [vmem:[%s6 + $0xd0] sm:$0xff]
    %v615 = vld [vmem:[%s6 + $0xd8] sm:$0xff]
    %v616 = vld [vmem:[%s6 + $0xe0] sm:$0xff]
    %v617 = vld [vmem:[%s6 + $0xe8] sm:$0xff]
    %v618 = vld [vmem:[%s6 + $0xf0] sm:$0xff]
    %v619 = vld [vmem:[%s6 + $0xf8] sm:$0xff]
    %v620 = vld [vmem:[%s8] sm:$0xff]
    %v622 = vlaneseq
    %v623 = vshrl.u32 %v622, 7
    %v624 = vsub.s32 0, %v623
    %v625 = vrot.slane %v620, %v624
    %v626 = vlaneseq
    %v627 = vshrl.u32 %v626, 7
    %v628 = vsub.s32 1, %v627
    %v629 = vrot.slane %v620, %v628
    %v630 = vlaneseq
    %v631 = vshrl.u32 %v630, 7
    %v632 = vsub.s32 2, %v631
    %v633 = vrot.slane %v620, %v632
    %v634 = vlaneseq
    %v635 = vshrl.u32 %v634, 7
    %v636 = vsub.s32 3, %v635
    %v637 = vrot.slane %v620, %v636
    %v638 = vlaneseq
    %v639 = vshrl.u32 %v638, 7
    %v640 = vsub.s32 4, %v639
    %v641 = vrot.slane %v620, %v640
    %v642 = vlaneseq
    %v643 = vshrl.u32 %v642, 7
    %v644 = vsub.s32 5, %v643
    %v645 = vrot.slane %v620, %v644
    %v646 = vlaneseq
    %v647 = vshrl.u32 %v646, 7
    %v648 = vsub.s32 6, %v647
    %v649 = vrot.slane %v620, %v648
    %v650 = vlaneseq
    %v651 = vshrl.u32 %v650, 7
    %v652 = vsub.s32 7, %v651
    %v653 = vrot.slane %v620, %v652
    %vm662 = vcmask 261120
    %v664 = vsel %vm662, %v583, 0
    %666 = vmatprep.subr.mxu0 0.0
    %667 = vmatpush1.msra.mxu0 0.0
    %668 = vmatprep.subr.mxu0 0.0
    %669 = vmatpush1.msra.mxu0 0.0
    %670 = vmatprep.subr.mxu0 0.0
    %671 = vmatpush1.msra.mxu0 0.0
    %672 = vmatprep.subr.mxu0 0.0
    %673 = vmatpush1.msra.mxu0 0.0
    %674 = vmatprep.subr.mxu0 0.0
    %675 = vmatpush1.msra.mxu0 0.0
    %676 = vmatprep.subr.mxu0 0.0
    %677 = vmatpush1.msra.mxu0 0.0
    %678 = vmatprep.subr.mxu0 0.0
    %679 = vmatpush1.msra.mxu0 0.0
    %680 = vmatprep.subr.mxu0 0.0
    %681 = vmatpush1.msra.mxu0 0.0
    %682 = vmatprep.subr.mxu0 0.0
    %683 = vmatpush1.msra.mxu0 0.0
    %684 = vmatprep.subr.mxu0 0.0
    %685 = vmatpush1.msra.mxu0 0.0
    %686 = vmatprep.subr.mxu0 0.0
    %687 = vmatpush1.msra.mxu0 0.0
    %688 = vmatprep.subr.mxu0 0.0
    %689 = vmatpush1.msra.mxu0 0.0
    %690 = vmatprep.subr.mxu0 %v613
    %691 = vmatpush1.msra.mxu0 %v612
    %692 = vmatprep.subr.mxu0 %v605
    %693 = vmatpush1.msra.mxu0 %v604
    %694 = vmatprep.subr.mxu0 %v597
    %695 = vmatpush1.msra.mxu0 %v596
    %696 = vmatprep.subr.mxu0 %v589
    %697 = vmatpush1.msra.mxu0 %v588
    %698 = vmatprep.subr.mxu0 0.0
    %699 = vmatpush2.msra.mxu0 0.0
    %700 = vmatprep.subr.mxu0 0.0
    %701 = vmatpush2.msra.mxu0 0.0
    %702 = vmatprep.subr.mxu0 0.0
    %703 = vmatpush2.msra.mxu0 0.0
    %704 = vmatprep.subr.mxu0 0.0
    %705 = vmatpush2.msra.mxu0 0.0
    %706 = vmatprep.subr.mxu0 0.0
    %707 = vmatpush2.msra.mxu0 0.0
    %708 = vmatprep.subr.mxu0 0.0
    %709 = vmatpush2.msra.mxu0 0.0
    %710 = vmatprep.subr.mxu0 0.0
    %711 = vmatpush2.msra.mxu0 0.0
    %712 = vmatprep.subr.mxu0 0.0
    %713 = vmatpush2.msra.mxu0 0.0
    %714 = vmatprep.subr.mxu0 0.0
    %715 = vmatpush2.msra.mxu0 0.0
    %716 = vmatprep.subr.mxu0 0.0
    %717 = vmatpush2.msra.mxu0 0.0
    %718 = vmatprep.subr.mxu0 0.0
    %719 = vmatpush2.msra.mxu0 0.0
    %720 = vmatprep.subr.mxu0 0.0
    %721 = vmatpush2.msra.mxu0 0.0
    %722 = vmatprep.subr.mxu0 0.0
    %723 = vmatpush2.msra.mxu0 0.0
    %724 = vmatprep.subr.mxu0 0.0
    %725 = vmatpush2.msra.mxu0 0.0
    %726 = vmatprep.subr.mxu0 0.0
    %727 = vmatpush2.msra.mxu0 0.0
    %728 = vmatprep.subr.mxu0 0.0
    %729 = vmatpush2.msra.mxu0 0.0
    %730 = vmatprep.mubr.f32.mxu0 0.0
    %731 = vmatmul.mubr.f32.gmra.mxu0 %v664
    %v732 = vpop.f32.mrf.mxu0
    %v733 = vadd.f32 %v625, %v732
    %v734 = vpop.f32.mrf.mxu0
    %v735 = vadd.f32 %v629, %v734
    %736 = vdwg.mxu0
    %737 = vmatprep.subr.mxu0 0.0
    %738 = vmatpush1.msra.mxu0 0.0
    %739 = vmatprep.subr.mxu0 0.0
    %740 = vmatpush1.msra.mxu0 0.0
    %741 = vmatprep.subr.mxu0 0.0
    %742 = vmatpush1.msra.mxu0 0.0
    %743 = vmatprep.subr.mxu0 0.0
    %744 = vmatpush1.msra.mxu0 0.0
    %745 = vmatprep.subr.mxu0 0.0
    %746 = vmatpush1.msra.mxu0 0.0
    %747 = vmatprep.subr.mxu0 0.0
    %748 = vmatpush1.msra.mxu0 0.0
    %749 = vmatprep.subr.mxu0 0.0
    %750 = vmatpush1.msra.mxu0 0.0
    %751 = vmatprep.subr.mxu0 0.0
    %752 = vmatpush1.msra.mxu0 0.0
    %753 = vmatprep.subr.mxu0 0.0
    %754 = vmatpush1.msra.mxu0 0.0
    %755 = vmatprep.subr.mxu0 0.0
    %756 = vmatpush1.msra.mxu0 0.0
    %757 = vmatprep.subr.mxu0 0.0
    %758 = vmatpush1.msra.mxu0 0.0
    %759 = vmatprep.subr.mxu0 0.0
    %760 = vmatpush1.msra.mxu0 0.0
    %761 = vmatprep.subr.mxu0 %v615
    %762 = vmatpush1.msra.mxu0 %v614
    %763 = vmatprep.subr.mxu0 %v607
    %764 = vmatpush1.msra.mxu0 %v606
    %765 = vmatprep.subr.mxu0 %v599
    %766 = vmatpush1.msra.mxu0 %v598
    %767 = vmatprep.subr.mxu0 %v591
    %768 = vmatpush1.msra.mxu0 %v590
    %769 = vmatprep.subr.mxu0 0.0
    %770 = vmatpush2.msra.mxu0 0.0
    %771 = vmatprep.subr.mxu0 0.0
    %772 = vmatpush2.msra.mxu0 0.0
    %773 = vmatprep.subr.mxu0 0.0
    %774 = vmatpush2.msra.mxu0 0.0
    %775 = vmatprep.subr.mxu0 0.0
    %776 = vmatpush2.msra.mxu0 0.0
    %777 = vmatprep.subr.mxu0 0.0
    %778 = vmatpush2.msra.mxu0 0.0
    %779 = vmatprep.subr.mxu0 0.0
    %780 = vmatpush2.msra.mxu0 0.0
    %781 = vmatprep.subr.mxu0 0.0
    %782 = vmatpush2.msra.mxu0 0.0
    %783 = vmatprep.subr.mxu0 0.0
    %784 = vmatpush2.msra.mxu0 0.0
    %785 = vmatprep.subr.mxu0 0.0
    %786 = vmatpush2.msra.mxu0 0.0
    %787 = vmatprep.subr.mxu0 0.0
    %788 = vmatpush2.msra.mxu0 0.0
    %789 = vmatprep.subr.mxu0 0.0
    %790 = vmatpush2.msra.mxu0 0.0
    %791 = vmatprep.subr.mxu0 0.0
    %792 = vmatpush2.msra.mxu0 0.0
    %793 = vmatprep.subr.mxu0 0.0
    %794 = vmatpush2.msra.mxu0 0.0
    %795 = vmatprep.subr.mxu0 0.0
    %796 = vmatpush2.msra.mxu0 0.0
    %797 = vmatprep.subr.mxu0 0.0
    %798 = vmatpush2.msra.mxu0 0.0
    %799 = vmatprep.subr.mxu0 0.0
    %800 = vmatpush2.msra.mxu0 0.0
    %801 = vmatprep.mubr.f32.mxu0 0.0
    %802 = vmatmul.mubr.f32.gmra.mxu0 %v664
    %v803 = vpop.f32.mrf.mxu0
    %v804 = vadd.f32 %v633, %v803
    %v805 = vpop.f32.mrf.mxu0
    %v806 = vadd.f32 %v637, %v805
    %807 = vdwg.mxu0
    %808 = vmatprep.subr.mxu0 0.0
    %809 = vmatpush1.msra.mxu0 0.0
    %810 = vmatprep.subr.mxu0 0.0
    %811 = vmatpush1.msra.mxu0 0.0
    %812 = vmatprep.subr.mxu0 0.0
    %813 = vmatpush1.msra.mxu0 0.0
    %814 = vmatprep.subr.mxu0 0.0
    %815 = vmatpush1.msra.mxu0 0.0
    %816 = vmatprep.subr.mxu0 0.0
    %817 = vmatpush1.msra.mxu0 0.0
    %818 = vmatprep.subr.mxu0 0.0
    %819 = vmatpush1.msra.mxu0 0.0
    %820 = vmatprep.subr.mxu0 0.0
    %821 = vmatpush1.msra.mxu0 0.0
    %822 = vmatprep.subr.mxu0 0.0
    %823 = vmatpush1.msra.mxu0 0.0
    %824 = vmatprep.subr.mxu0 0.0
    %825 = vmatpush1.msra.mxu0 0.0
    %826 = vmatprep.subr.mxu0 0.0
    %827 = vmatpush1.msra.mxu0 0.0
    %828 = vmatprep.subr.mxu0 0.0
    %829 = vmatpush1.msra.mxu0 0.0
    %830 = vmatprep.subr.mxu0 0.0
    %831 = vmatpush1.msra.mxu0 0.0
    %832 = vmatprep.subr.mxu0 %v617
    %833 = vmatpush1.msra.mxu0 %v616
    %834 = vmatprep.subr.mxu0 %v609
    %835 = vmatpush1.msra.mxu0 %v608
    %836 = vmatprep.subr.mxu0 %v601
    %837 = vmatpush1.msra.mxu0 %v600
    %838 = vmatprep.subr.mxu0 %v593
    %839 = vmatpush1.msra.mxu0 %v592
    %840 = vmatprep.subr.mxu0 0.0
    %841 = vmatpush2.msra.mxu0 0.0
    %842 = vmatprep.subr.mxu0 0.0
    %843 = vmatpush2.msra.mxu0 0.0
    %844 = vmatprep.subr.mxu0 0.0
    %845 = vmatpush2.msra.mxu0 0.0
    %846 = vmatprep.subr.mxu0 0.0
    %847 = vmatpush2.msra.mxu0 0.0
    %848 = vmatprep.subr.mxu0 0.0
    %849 = vmatpush2.msra.mxu0 0.0
    %850 = vmatprep.subr.mxu0 0.0
    %851 = vmatpush2.msra.mxu0 0.0
    %852 = vmatprep.subr.mxu0 0.0
    %853 = vmatpush2.msra.mxu0 0.0
    %854 = vmatprep.subr.mxu0 0.0
    %855 = vmatpush2.msra.mxu0 0.0
    %856 = vmatprep.subr.mxu0 0.0
    %857 = vmatpush2.msra.mxu0 0.0
    %858 = vmatprep.subr.mxu0 0.0
    %859 = vmatpush2.msra.mxu0 0.0
    %860 = vmatprep.subr.mxu0 0.0
    %861 = vmatpush2.msra.mxu0 0.0
    %862 = vmatprep.subr.mxu0 0.0
    %863 = vmatpush2.msra.mxu0 0.0
    %864 = vmatprep.subr.mxu0 0.0
    %865 = vmatpush2.msra.mxu0 0.0
    %866 = vmatprep.subr.mxu0 0.0
    %867 = vmatpush2.msra.mxu0 0.0
    %868 = vmatprep.subr.mxu0 0.0
    %869 = vmatpush2.msra.mxu0 0.0
    %870 = vmatprep.subr.mxu0 0.0
    %871 = vmatpush2.msra.mxu0 0.0
    %872 = vmatprep.mubr.f32.mxu0 0.0
    %873 = vmatmul.mubr.f32.gmra.mxu0 %v664
    %v874 = vpop.f32.mrf.mxu0
    %v875 = vadd.f32 %v641, %v874
    %v876 = vpop.f32.mrf.mxu0
    %v877 = vadd.f32 %v645, %v876
    %878 = vdwg.mxu0
    %879 = vmatprep.subr.mxu0 0.0
    %880 = vmatpush1.msra.mxu0 0.0
    %881 = vmatprep.subr.mxu0 0.0
    %882 = vmatpush1.msra.mxu0 0.0
    %883 = vmatprep.subr.mxu0 0.0
    %884 = vmatpush1.msra.mxu0 0.0
    %885 = vmatprep.subr.mxu0 0.0
    %886 = vmatpush1.msra.mxu0 0.0
    %887 = vmatprep.subr.mxu0 0.0
    %888 = vmatpush1.msra.mxu0 0.0
    %889 = vmatprep.subr.mxu0 0.0
    %890 = vmatpush1.msra.mxu0 0.0
    %891 = vmatprep.subr.mxu0 0.0
    %892 = vmatpush1.msra.mxu0 0.0
    %893 = vmatprep.subr.mxu0 0.0
    %894 = vmatpush1.msra.mxu0 0.0
    %895 = vmatprep.subr.mxu0 0.0
    %896 = vmatpush1.msra.mxu0 0.0
    %897 = vmatprep.subr.mxu0 0.0
    %898 = vmatpush1.msra.mxu0 0.0
    %899 = vmatprep.subr.mxu0 0.0
    %900 = vmatpush1.msra.mxu0 0.0
    %901 = vmatprep.subr.mxu0 0.0
    %902 = vmatpush1.msra.mxu0 0.0
    %903 = vmatprep.subr.mxu0 %v619
    %904 = vmatpush1.msra.mxu0 %v618
    %905 = vmatprep.subr.mxu0 %v611
    %906 = vmatpush1.msra.mxu0 %v610
    %907 = vmatprep.subr.mxu0 %v603
    %908 = vmatpush1.msra.mxu0 %v602
    %909 = vmatprep.subr.mxu0 %v595
    %910 = vmatpush1.msra.mxu0 %v594
    %911 = vmatprep.subr.mxu0 0.0
    %912 = vmatpush2.msra.mxu0 0.0
    %913 = vmatprep.subr.mxu0 0.0
    %914 = vmatpush2.msra.mxu0 0.0
    %915 = vmatprep.subr.mxu0 0.0
    %916 = vmatpush2.msra.mxu0 0.0
    %917 = vmatprep.subr.mxu0 0.0
    %918 = vmatpush2.msra.mxu0 0.0
    %919 = vmatprep.subr.mxu0 0.0
    %920 = vmatpush2.msra.mxu0 0.0
    %921 = vmatprep.subr.mxu0 0.0
    %922 = vmatpush2.msra.mxu0 0.0
    %923 = vmatprep.subr.mxu0 0.0
    %924 = vmatpush2.msra.mxu0 0.0
    %925 = vmatprep.subr.mxu0 0.0
    %926 = vmatpush2.msra.mxu0 0.0
    %927 = vmatprep.subr.mxu0 0.0
    %928 = vmatpush2.msra.mxu0 0.0
    %929 = vmatprep.subr.mxu0 0.0
    %930 = vmatpush2.msra.mxu0 0.0
    %931 = vmatprep.subr.mxu0 0.0
    %932 = vmatpush2.msra.mxu0 0.0
    %933 = vmatprep.subr.mxu0 0.0
    %934 = vmatpush2.msra.mxu0 0.0
    %935 = vmatprep.subr.mxu0 0.0
    %936 = vmatpush2.msra.mxu0 0.0
    %937 = vmatprep.subr.mxu0 0.0
    %938 = vmatpush2.msra.mxu0 0.0
    %939 = vmatprep.subr.mxu0 0.0
    %940 = vmatpush2.msra.mxu0 0.0
    %941 = vmatprep.subr.mxu0 0.0
    %942 = vmatpush2.msra.mxu0 0.0
    %943 = vmatprep.mubr.f32.mxu0 0.0
    %944 = vmatmul.mubr.f32.gmra.mxu0 %v664
    %v945 = vpop.f32.mrf.mxu0
    %v946 = vadd.f32 %v649, %v945
    %v947 = vpop.f32.mrf.mxu0
    %v948 = vadd.f32 %v653, %v947
    %949 = vdwg.mxu0
    %v950 = vmul.u32 %v504, 4
    %vm951 = vcmp.ge.s32.totalorder %v506, %v950
    %v952 = vadd.s32 %v950, 4
    %vm953 = vcmp.lt.s32.totalorder %v506, %v952
    %vm954 = vmand %vm951, %vm953
    %v955 = vsel %vm954, 1.0, 0.0
    %v956 = vld [vmem:[%s2] sm:$0xff]
    %v957 = vld [vmem:[%s7] sm:$0xff]
    %v958 = vld [vmem:[%s7 + $0x8] sm:$0xff]
    %v959 = vld [vmem:[%s7 + $0x10] sm:$0xff]
    %v960 = vld [vmem:[%s7 + $0x18] sm:$0xff]
    %v961 = vld [vmem:[%s7 + $0x20] sm:$0xff]
    %v962 = vld [vmem:[%s7 + $0x28] sm:$0xff]
    %v963 = vld [vmem:[%s7 + $0x30] sm:$0xff]
    %v964 = vld [vmem:[%s7 + $0x38] sm:$0xff]
    %v966 = vsel %vm260, %v956, 0
    %968 = vmatprep.subr.mxu0 0.0
    %969 = vmatpush1.msra.mxu0 0.0
    %970 = vmatprep.subr.mxu0 0.0
    %971 = vmatpush1.msra.mxu0 0.0
    %972 = vmatprep.subr.mxu0 0.0
    %973 = vmatpush1.msra.mxu0 0.0
    %974 = vmatprep.subr.mxu0 0.0
    %975 = vmatpush1.msra.mxu0 0.0
    %976 = vmatprep.subr.mxu0 0.0
    %977 = vmatpush1.msra.mxu0 0.0
    %978 = vmatprep.subr.mxu0 0.0
    %979 = vmatpush1.msra.mxu0 0.0
    %980 = vmatprep.subr.mxu0 0.0
    %981 = vmatpush1.msra.mxu0 0.0
    %982 = vmatprep.subr.mxu0 0.0
    %983 = vmatpush1.msra.mxu0 0.0
    %984 = vmatprep.subr.mxu0 0.0
    %985 = vmatpush1.msra.mxu0 0.0
    %986 = vmatprep.subr.mxu0 0.0
    %987 = vmatpush1.msra.mxu0 0.0
    %988 = vmatprep.subr.mxu0 0.0
    %989 = vmatpush1.msra.mxu0 0.0
    %990 = vmatprep.subr.mxu0 0.0
    %991 = vmatpush1.msra.mxu0 0.0
    %992 = vmatprep.subr.mxu0 0.0
    %993 = vmatpush1.msra.mxu0 0.0
    %994 = vmatprep.subr.mxu0 0.0
    %995 = vmatpush1.msra.mxu0 0.0
    %996 = vmatprep.subr.mxu0 0.0
    %997 = vmatpush1.msra.mxu0 0.0
    %998 = vmatprep.subr.mxu0 %v958
    %999 = vmatpush1.msra.mxu0 %v957
    %1000 = vmatprep.subr.mxu0 0.0
    %1001 = vmatpush2.msra.mxu0 0.0
    %1002 = vmatprep.subr.mxu0 0.0
    %1003 = vmatpush2.msra.mxu0 0.0
    %1004 = vmatprep.subr.mxu0 0.0
    %1005 = vmatpush2.msra.mxu0 0.0
    %1006 = vmatprep.subr.mxu0 0.0
    %1007 = vmatpush2.msra.mxu0 0.0
    %1008 = vmatprep.subr.mxu0 0.0
    %1009 = vmatpush2.msra.mxu0 0.0
    %1010 = vmatprep.subr.mxu0 0.0
    %1011 = vmatpush2.msra.mxu0 0.0
    %1012 = vmatprep.subr.mxu0 0.0
    %1013 = vmatpush2.msra.mxu0 0.0
    %1014 = vmatprep.subr.mxu0 0.0
    %1015 = vmatpush2.msra.mxu0 0.0
    %1016 = vmatprep.subr.mxu0 0.0
    %1017 = vmatpush2.msra.mxu0 0.0
    %1018 = vmatprep.subr.mxu0 0.0
    %1019 = vmatpush2.msra.mxu0 0.0
    %1020 = vmatprep.subr.mxu0 0.0
    %1021 = vmatpush2.msra.mxu0 0.0
    %1022 = vmatprep.subr.mxu0 0.0
    %1023 = vmatpush2.msra.mxu0 0.0
    %1024 = vmatprep.subr.mxu0 0.0
    %1025 = vmatpush2.msra.mxu0 0.0
    %1026 = vmatprep.subr.mxu0 0.0
    %1027 = vmatpush2.msra.mxu0 0.0
    %1028 = vmatprep.subr.mxu0 0.0
    %1029 = vmatpush2.msra.mxu0 0.0
    %1030 = vmatprep.subr.mxu0 0.0
    %1031 = vmatpush2.msra.mxu0 0.0
    %1032 = vmatprep.mubr.f32.mxu0 0.0
    %1033 = vmatmul.mubr.f32.gmra.mxu0 %v966
    %v1034 = vpop.f32.mrf.mxu0
    %v1035 = vadd.f32 0.0, %v1034
    %v1036 = vpop.f32.mrf.mxu0
    %v1037 = vadd.f32 0.0, %v1036
    %1038 = vdwg.mxu0
    %1039 = vmatprep.subr.mxu0 0.0
    %1040 = vmatpush1.msra.mxu0 0.0
    %1041 = vmatprep.subr.mxu0 0.0
    %1042 = vmatpush1.msra.mxu0 0.0
    %1043 = vmatprep.subr.mxu0 0.0
    %1044 = vmatpush1.msra.mxu0 0.0
    %1045 = vmatprep.subr.mxu0 0.0
    %1046 = vmatpush1.msra.mxu0 0.0
    %1047 = vmatprep.subr.mxu0 0.0
    %1048 = vmatpush1.msra.mxu0 0.0
    %1049 = vmatprep.subr.mxu0 0.0
    %1050 = vmatpush1.msra.mxu0 0.0
    %1051 = vmatprep.subr.mxu0 0.0
    %1052 = vmatpush1.msra.mxu0 0.0
    %1053 = vmatprep.subr.mxu0 0.0
    %1054 = vmatpush1.msra.mxu0 0.0
    %1055 = vmatprep.subr.mxu0 0.0
    %1056 = vmatpush1.msra.mxu0 0.0
    %1057 = vmatprep.subr.mxu0 0.0
    %1058 = vmatpush1.msra.mxu0 0.0
    %1059 = vmatprep.subr.mxu0 0.0
    %1060 = vmatpush1.msra.mxu0 0.0
    %1061 = vmatprep.subr.mxu0 0.0
    %1062 = vmatpush1.msra.mxu0 0.0
    %1063 = vmatprep.subr.mxu0 0.0
    %1064 = vmatpush1.msra.mxu0 0.0
    %1065 = vmatprep.subr.mxu0 0.0
    %1066 = vmatpush1.msra.mxu0 0.0
    %1067 = vmatprep.subr.mxu0 0.0
    %1068 = vmatpush1.msra.mxu0 0.0
    %1069 = vmatprep.subr.mxu0 %v960
    %1070 = vmatpush1.msra.mxu0 %v959
    %1071 = vmatprep.subr.mxu0 0.0
    %1072 = vmatpush2.msra.mxu0 0.0
    %1073 = vmatprep.subr.mxu0 0.0
    %1074 = vmatpush2.msra.mxu0 0.0
    %1075 = vmatprep.subr.mxu0 0.0
    %1076 = vmatpush2.msra.mxu0 0.0
    %1077 = vmatprep.subr.mxu0 0.0
    %1078 = vmatpush2.msra.mxu0 0.0
    %1079 = vmatprep.subr.mxu0 0.0
    %1080 = vmatpush2.msra.mxu0 0.0
    %1081 = vmatprep.subr.mxu0 0.0
    %1082 = vmatpush2.msra.mxu0 0.0
    %1083 = vmatprep.subr.mxu0 0.0
    %1084 = vmatpush2.msra.mxu0 0.0
    %1085 = vmatprep.subr.mxu0 0.0
    %1086 = vmatpush2.msra.mxu0 0.0
    %1087 = vmatprep.subr.mxu0 0.0
    %1088 = vmatpush2.msra.mxu0 0.0
    %1089 = vmatprep.subr.mxu0 0.0
    %1090 = vmatpush2.msra.mxu0 0.0
    %1091 = vmatprep.subr.mxu0 0.0
    %1092 = vmatpush2.msra.mxu0 0.0
    %1093 = vmatprep.subr.mxu0 0.0
    %1094 = vmatpush2.msra.mxu0 0.0
    %1095 = vmatprep.subr.mxu0 0.0
    %1096 = vmatpush2.msra.mxu0 0.0
    %1097 = vmatprep.subr.mxu0 0.0
    %1098 = vmatpush2.msra.mxu0 0.0
    %1099 = vmatprep.subr.mxu0 0.0
    %1100 = vmatpush2.msra.mxu0 0.0
    %1101 = vmatprep.subr.mxu0 0.0
    %1102 = vmatpush2.msra.mxu0 0.0
    %1103 = vmatprep.mubr.f32.mxu0 0.0
    %1104 = vmatmul.mubr.f32.gmra.mxu0 %v966
    %v1105 = vpop.f32.mrf.mxu0
    %v1106 = vadd.f32 0.0, %v1105
    %v1107 = vpop.f32.mrf.mxu0
    %v1108 = vadd.f32 0.0, %v1107
    %1109 = vdwg.mxu0
    %1110 = vmatprep.subr.mxu0 0.0
    %1111 = vmatpush1.msra.mxu0 0.0
    %1112 = vmatprep.subr.mxu0 0.0
    %1113 = vmatpush1.msra.mxu0 0.0
    %1114 = vmatprep.subr.mxu0 0.0
    %1115 = vmatpush1.msra.mxu0 0.0
    %1116 = vmatprep.subr.mxu0 0.0
    %1117 = vmatpush1.msra.mxu0 0.0
    %1118 = vmatprep.subr.mxu0 0.0
    %1119 = vmatpush1.msra.mxu0 0.0
    %1120 = vmatprep.subr.mxu0 0.0
    %1121 = vmatpush1.msra.mxu0 0.0
    %1122 = vmatprep.subr.mxu0 0.0
    %1123 = vmatpush1.msra.mxu0 0.0
    %1124 = vmatprep.subr.mxu0 0.0
    %1125 = vmatpush1.msra.mxu0 0.0
    %1126 = vmatprep.subr.mxu0 0.0
    %1127 = vmatpush1.msra.mxu0 0.0
    %1128 = vmatprep.subr.mxu0 0.0
    %1129 = vmatpush1.msra.mxu0 0.0
    %1130 = vmatprep.subr.mxu0 0.0
    %1131 = vmatpush1.msra.mxu0 0.0
    %1132 = vmatprep.subr.mxu0 0.0
    %1133 = vmatpush1.msra.mxu0 0.0
    %1134 = vmatprep.subr.mxu0 0.0
    %1135 = vmatpush1.msra.mxu0 0.0
    %1136 = vmatprep.subr.mxu0 0.0
    %1137 = vmatpush1.msra.mxu0 0.0
    %1138 = vmatprep.subr.mxu0 0.0
    %1139 = vmatpush1.msra.mxu0 0.0
    %1140 = vmatprep.subr.mxu0 %v962
    %1141 = vmatpush1.msra.mxu0 %v961
    %1142 = vmatprep.subr.mxu0 0.0
    %1143 = vmatpush2.msra.mxu0 0.0
    %1144 = vmatprep.subr.mxu0 0.0
    %1145 = vmatpush2.msra.mxu0 0.0
    %1146 = vmatprep.subr.mxu0 0.0
    %1147 = vmatpush2.msra.mxu0 0.0
    %1148 = vmatprep.subr.mxu0 0.0
    %1149 = vmatpush2.msra.mxu0 0.0
    %1150 = vmatprep.subr.mxu0 0.0
    %1151 = vmatpush2.msra.mxu0 0.0
    %1152 = vmatprep.subr.mxu0 0.0
    %1153 = vmatpush2.msra.mxu0 0.0
    %1154 = vmatprep.subr.mxu0 0.0
    %1155 = vmatpush2.msra.mxu0 0.0
    %1156 = vmatprep.subr.mxu0 0.0
    %1157 = vmatpush2.msra.mxu0 0.0
    %1158 = vmatprep.subr.mxu0 0.0
    %1159 = vmatpush2.msra.mxu0 0.0
    %1160 = vmatprep.subr.mxu0 0.0
    %1161 = vmatpush2.msra.mxu0 0.0
    %1162 = vmatprep.subr.mxu0 0.0
    %1163 = vmatpush2.msra.mxu0 0.0
    %1164 = vmatprep.subr.mxu0 0.0
    %1165 = vmatpush2.msra.mxu0 0.0
    %1166 = vmatprep.subr.mxu0 0.0
    %1167 = vmatpush2.msra.mxu0 0.0
    %1168 = vmatprep.subr.mxu0 0.0
    %1169 = vmatpush2.msra.mxu0 0.0
    %1170 = vmatprep.subr.mxu0 0.0
    %1171 = vmatpush2.msra.mxu0 0.0
    %1172 = vmatprep.subr.mxu0 0.0
    %1173 = vmatpush2.msra.mxu0 0.0
    %1174 = vmatprep.mubr.f32.mxu0 0.0
    %1175 = vmatmul.mubr.f32.gmra.mxu0 %v966
    %v1176 = vpop.f32.mrf.mxu0
    %v1177 = vadd.f32 0.0, %v1176
    %v1178 = vpop.f32.mrf.mxu0
    %v1179 = vadd.f32 0.0, %v1178
    %1180 = vdwg.mxu0
    %1181 = vmatprep.subr.mxu0 0.0
    %1182 = vmatpush1.msra.mxu0 0.0
    %1183 = vmatprep.subr.mxu0 0.0
    %1184 = vmatpush1.msra.mxu0 0.0
    %1185 = vmatprep.subr.mxu0 0.0
    %1186 = vmatpush1.msra.mxu0 0.0
    %1187 = vmatprep.subr.mxu0 0.0
    %1188 = vmatpush1.msra.mxu0 0.0
    %1189 = vmatprep.subr.mxu0 0.0
    %1190 = vmatpush1.msra.mxu0 0.0
    %1191 = vmatprep.subr.mxu0 0.0
    %1192 = vmatpush1.msra.mxu0 0.0
    %1193 = vmatprep.subr.mxu0 0.0
    %1194 = vmatpush1.msra.mxu0 0.0
    %1195 = vmatprep.subr.mxu0 0.0
    %1196 = vmatpush1.msra.mxu0 0.0
    %1197 = vmatprep.subr.mxu0 0.0
    %1198 = vmatpush1.msra.mxu0 0.0
    %1199 = vmatprep.subr.mxu0 0.0
    %1200 = vmatpush1.msra.mxu0 0.0
    %1201 = vmatprep.subr.mxu0 0.0
    %1202 = vmatpush1.msra.mxu0 0.0
    %1203 = vmatprep.subr.mxu0 0.0
    %1204 = vmatpush1.msra.mxu0 0.0
    %1205 = vmatprep.subr.mxu0 0.0
    %1206 = vmatpush1.msra.mxu0 0.0
    %1207 = vmatprep.subr.mxu0 0.0
    %1208 = vmatpush1.msra.mxu0 0.0
    %1209 = vmatprep.subr.mxu0 0.0
    %1210 = vmatpush1.msra.mxu0 0.0
    %1211 = vmatprep.subr.mxu0 %v964
    %1212 = vmatpush1.msra.mxu0 %v963
    %1213 = vmatprep.subr.mxu0 0.0
    %1214 = vmatpush2.msra.mxu0 0.0
    %1215 = vmatprep.subr.mxu0 0.0
    %1216 = vmatpush2.msra.mxu0 0.0
    %1217 = vmatprep.subr.mxu0 0.0
    %1218 = vmatpush2.msra.mxu0 0.0
    %1219 = vmatprep.subr.mxu0 0.0
    %1220 = vmatpush2.msra.mxu0 0.0
    %1221 = vmatprep.subr.mxu0 0.0
    %1222 = vmatpush2.msra.mxu0 0.0
    %1223 = vmatprep.subr.mxu0 0.0
    %1224 = vmatpush2.msra.mxu0 0.0
    %1225 = vmatprep.subr.mxu0 0.0
    %1226 = vmatpush2.msra.mxu0 0.0
    %1227 = vmatprep.subr.mxu0 0.0
    %1228 = vmatpush2.msra.mxu0 0.0
    %1229 = vmatprep.subr.mxu0 0.0
    %1230 = vmatpush2.msra.mxu0 0.0
    %1231 = vmatprep.subr.mxu0 0.0
    %1232 = vmatpush2.msra.mxu0 0.0
    %1233 = vmatprep.subr.mxu0 0.0
    %1234 = vmatpush2.msra.mxu0 0.0
    %1235 = vmatprep.subr.mxu0 0.0
    %1236 = vmatpush2.msra.mxu0 0.0
    %1237 = vmatprep.subr.mxu0 0.0
    %1238 = vmatpush2.msra.mxu0 0.0
    %1239 = vmatprep.subr.mxu0 0.0
    %1240 = vmatpush2.msra.mxu0 0.0
    %1241 = vmatprep.subr.mxu0 0.0
    %1242 = vmatpush2.msra.mxu0 0.0
    %1243 = vmatprep.subr.mxu0 0.0
    %1244 = vmatpush2.msra.mxu0 0.0
    %1245 = vmatprep.mubr.f32.mxu0 0.0
    %1246 = vmatmul.mubr.f32.gmra.mxu0 %v966
    %v1247 = vpop.f32.mrf.mxu0
    %v1248 = vadd.f32 0.0, %v1247
    %v1249 = vpop.f32.mrf.mxu0
    %v1250 = vadd.f32 0.0, %v1249
    %1251 = vdwg.mxu0
    %vm1252 = vcmask 15360
    %v1254 = vsel %vm1252, %v955, 0
    %vm1256 = vcmask 1041408
    %v1258 = vsel %vm1256, %v733, 0
    %v1261 = vsel %vm1256, %v735, 0
    %v1264 = vsel %vm1256, %v804, 0
    %v1267 = vsel %vm1256, %v806, 0
    %v1270 = vsel %vm1256, %v875, 0
    %v1273 = vsel %vm1256, %v877, 0
    %v1276 = vsel %vm1256, %v946, 0
    %v1279 = vsel %vm1256, %v948, 0
    %1281 = vmatprep.subr.mxu0 0.0
    %1282 = vmatpush1.msra.mxu0 0.0
    %1283 = vmatprep.subr.mxu0 0.0
    %1284 = vmatpush1.msra.mxu0 0.0
    %1285 = vmatprep.subr.mxu0 0.0
    %1286 = vmatpush1.msra.mxu0 0.0
    %1287 = vmatprep.subr.mxu0 0.0
    %1288 = vmatpush1.msra.mxu0 0.0
    %1289 = vmatprep.subr.mxu0 0.0
    %1290 = vmatpush1.msra.mxu0 0.0
    %1291 = vmatprep.subr.mxu0 0.0
    %1292 = vmatpush1.msra.mxu0 0.0
    %1293 = vmatprep.subr.mxu0 0.0
    %1294 = vmatpush1.msra.mxu0 0.0
    %1295 = vmatprep.subr.mxu0 0.0
    %1296 = vmatpush1.msra.mxu0 0.0
    %1297 = vmatprep.subr.mxu0 0.0
    %1298 = vmatpush1.msra.mxu0 0.0
    %1299 = vmatprep.subr.mxu0 0.0
    %1300 = vmatpush1.msra.mxu0 0.0
    %1301 = vmatprep.subr.mxu0 0.0
    %1302 = vmatpush1.msra.mxu0 0.0
    %1303 = vmatprep.subr.mxu0 0.0
    %1304 = vmatpush1.msra.mxu0 0.0
    %1305 = vmatprep.subr.mxu0 0.0
    %1306 = vmatpush1.msra.mxu0 0.0
    %1307 = vmatprep.subr.mxu0 0.0
    %1308 = vmatpush1.msra.mxu0 0.0
    %1309 = vmatprep.subr.mxu0 0.0
    %1310 = vmatpush1.msra.mxu0 0.0
    %1311 = vmatprep.subr.mxu0 %v1261
    %1312 = vmatpush1.msra.mxu0 %v1258
    %1313 = vmatprep.subr.mxu0 0.0
    %1314 = vmatpush2.msra.mxu0 0.0
    %1315 = vmatprep.subr.mxu0 0.0
    %1316 = vmatpush2.msra.mxu0 0.0
    %1317 = vmatprep.subr.mxu0 0.0
    %1318 = vmatpush2.msra.mxu0 0.0
    %1319 = vmatprep.subr.mxu0 0.0
    %1320 = vmatpush2.msra.mxu0 0.0
    %1321 = vmatprep.subr.mxu0 0.0
    %1322 = vmatpush2.msra.mxu0 0.0
    %1323 = vmatprep.subr.mxu0 0.0
    %1324 = vmatpush2.msra.mxu0 0.0
    %1325 = vmatprep.subr.mxu0 0.0
    %1326 = vmatpush2.msra.mxu0 0.0
    %1327 = vmatprep.subr.mxu0 0.0
    %1328 = vmatpush2.msra.mxu0 0.0
    %1329 = vmatprep.subr.mxu0 0.0
    %1330 = vmatpush2.msra.mxu0 0.0
    %1331 = vmatprep.subr.mxu0 0.0
    %1332 = vmatpush2.msra.mxu0 0.0
    %1333 = vmatprep.subr.mxu0 0.0
    %1334 = vmatpush2.msra.mxu0 0.0
    %1335 = vmatprep.subr.mxu0 0.0
    %1336 = vmatpush2.msra.mxu0 0.0
    %1337 = vmatprep.subr.mxu0 0.0
    %1338 = vmatpush2.msra.mxu0 0.0
    %1339 = vmatprep.subr.mxu0 0.0
    %1340 = vmatpush2.msra.mxu0 0.0
    %1341 = vmatprep.subr.mxu0 0.0
    %1342 = vmatpush2.msra.mxu0 0.0
    %1343 = vmatprep.subr.mxu0 0.0
    %1344 = vmatpush2.msra.mxu0 0.0
    %1345 = vmatprep.mubr.f32.mxu0 0.0
    %1346 = vmatmul.mubr.f32.gmra.mxu0 %v1254
    %v1347 = vpop.f32.mrf.mxu0
    %v1348 = vadd.f32 %v1035, %v1347
    %v1349 = vpop.f32.mrf.mxu0
    %v1350 = vadd.f32 %v1037, %v1349
    %1351 = vdwg.mxu0
    %1352 = vmatprep.subr.mxu0 0.0
    %1353 = vmatpush1.msra.mxu0 0.0
    %1354 = vmatprep.subr.mxu0 0.0
    %1355 = vmatpush1.msra.mxu0 0.0
    %1356 = vmatprep.subr.mxu0 0.0
    %1357 = vmatpush1.msra.mxu0 0.0
    %1358 = vmatprep.subr.mxu0 0.0
    %1359 = vmatpush1.msra.mxu0 0.0
    %1360 = vmatprep.subr.mxu0 0.0
    %1361 = vmatpush1.msra.mxu0 0.0
    %1362 = vmatprep.subr.mxu0 0.0
    %1363 = vmatpush1.msra.mxu0 0.0
    %1364 = vmatprep.subr.mxu0 0.0
    %1365 = vmatpush1.msra.mxu0 0.0
    %1366 = vmatprep.subr.mxu0 0.0
    %1367 = vmatpush1.msra.mxu0 0.0
    %1368 = vmatprep.subr.mxu0 0.0
    %1369 = vmatpush1.msra.mxu0 0.0
    %1370 = vmatprep.subr.mxu0 0.0
    %1371 = vmatpush1.msra.mxu0 0.0
    %1372 = vmatprep.subr.mxu0 0.0
    %1373 = vmatpush1.msra.mxu0 0.0
    %1374 = vmatprep.subr.mxu0 0.0
    %1375 = vmatpush1.msra.mxu0 0.0
    %1376 = vmatprep.subr.mxu0 0.0
    %1377 = vmatpush1.msra.mxu0 0.0
    %1378 = vmatprep.subr.mxu0 0.0
    %1379 = vmatpush1.msra.mxu0 0.0
    %1380 = vmatprep.subr.mxu0 0.0
    %1381 = vmatpush1.msra.mxu0 0.0
    %1382 = vmatprep.subr.mxu0 %v1267
    %1383 = vmatpush1.msra.mxu0 %v1264
    %1384 = vmatprep.subr.mxu0 0.0
    %1385 = vmatpush2.msra.mxu0 0.0
    %1386 = vmatprep.subr.mxu0 0.0
    %1387 = vmatpush2.msra.mxu0 0.0
    %1388 = vmatprep.subr.mxu0 0.0
    %1389 = vmatpush2.msra.mxu0 0.0
    %1390 = vmatprep.subr.mxu0 0.0
    %1391 = vmatpush2.msra.mxu0 0.0
    %1392 = vmatprep.subr.mxu0 0.0
    %1393 = vmatpush2.msra.mxu0 0.0
    %1394 = vmatprep.subr.mxu0 0.0
    %1395 = vmatpush2.msra.mxu0 0.0
    %1396 = vmatprep.subr.mxu0 0.0
    %1397 = vmatpush2.msra.mxu0 0.0
    %1398 = vmatprep.subr.mxu0 0.0
    %1399 = vmatpush2.msra.mxu0 0.0
    %1400 = vmatprep.subr.mxu0 0.0
    %1401 = vmatpush2.msra.mxu0 0.0
    %1402 = vmatprep.subr.mxu0 0.0
    %1403 = vmatpush2.msra.mxu0 0.0
    %1404 = vmatprep.subr.mxu0 0.0
    %1405 = vmatpush2.msra.mxu0 0.0
    %1406 = vmatprep.subr.mxu0 0.0
    %1407 = vmatpush2.msra.mxu0 0.0
    %1408 = vmatprep.subr.mxu0 0.0
    %1409 = vmatpush2.msra.mxu0 0.0
    %1410 = vmatprep.subr.mxu0 0.0
    %1411 = vmatpush2.msra.mxu0 0.0
    %1412 = vmatprep.subr.mxu0 0.0
    %1413 = vmatpush2.msra.mxu0 0.0
    %1414 = vmatprep.subr.mxu0 0.0
    %1415 = vmatpush2.msra.mxu0 0.0
    %1416 = vmatprep.mubr.f32.mxu0 0.0
    %1417 = vmatmul.mubr.f32.gmra.mxu0 %v1254
    %v1418 = vpop.f32.mrf.mxu0
    %v1419 = vadd.f32 %v1106, %v1418
    %v1420 = vpop.f32.mrf.mxu0
    %v1421 = vadd.f32 %v1108, %v1420
    %1422 = vdwg.mxu0
    %1423 = vmatprep.subr.mxu0 0.0
    %1424 = vmatpush1.msra.mxu0 0.0
    %1425 = vmatprep.subr.mxu0 0.0
    %1426 = vmatpush1.msra.mxu0 0.0
    %1427 = vmatprep.subr.mxu0 0.0
    %1428 = vmatpush1.msra.mxu0 0.0
    %1429 = vmatprep.subr.mxu0 0.0
    %1430 = vmatpush1.msra.mxu0 0.0
    %1431 = vmatprep.subr.mxu0 0.0
    %1432 = vmatpush1.msra.mxu0 0.0
    %1433 = vmatprep.subr.mxu0 0.0
    %1434 = vmatpush1.msra.mxu0 0.0
    %1435 = vmatprep.subr.mxu0 0.0
    %1436 = vmatpush1.msra.mxu0 0.0
    %1437 = vmatprep.subr.mxu0 0.0
    %1438 = vmatpush1.msra.mxu0 0.0
    %1439 = vmatprep.subr.mxu0 0.0
    %1440 = vmatpush1.msra.mxu0 0.0
    %1441 = vmatprep.subr.mxu0 0.0
    %1442 = vmatpush1.msra.mxu0 0.0
    %1443 = vmatprep.subr.mxu0 0.0
    %1444 = vmatpush1.msra.mxu0 0.0
    %1445 = vmatprep.subr.mxu0 0.0
    %1446 = vmatpush1.msra.mxu0 0.0
    %1447 = vmatprep.subr.mxu0 0.0
    %1448 = vmatpush1.msra.mxu0 0.0
    %1449 = vmatprep.subr.mxu0 0.0
    %1450 = vmatpush1.msra.mxu0 0.0
    %1451 = vmatprep.subr.mxu0 0.0
    %1452 = vmatpush1.msra.mxu0 0.0
    %1453 = vmatprep.subr.mxu0 %v1273
    %1454 = vmatpush1.msra.mxu0 %v1270
    %1455 = vmatprep.subr.mxu0 0.0
    %1456 = vmatpush2.msra.mxu0 0.0
    %1457 = vmatprep.subr.mxu0 0.0
    %1458 = vmatpush2.msra.mxu0 0.0
    %1459 = vmatprep.subr.mxu0 0.0
    %1460 = vmatpush2.msra.mxu0 0.0
    %1461 = vmatprep.subr.mxu0 0.0
    %1462 = vmatpush2.msra.mxu0 0.0
    %1463 = vmatprep.subr.mxu0 0.0
    %1464 = vmatpush2.msra.mxu0 0.0
    %1465 = vmatprep.subr.mxu0 0.0
    %1466 = vmatpush2.msra.mxu0 0.0
    %1467 = vmatprep.subr.mxu0 0.0
    %1468 = vmatpush2.msra.mxu0 0.0
    %1469 = vmatprep.subr.mxu0 0.0
    %1470 = vmatpush2.msra.mxu0 0.0
    %1471 = vmatprep.subr.mxu0 0.0
    %1472 = vmatpush2.msra.mxu0 0.0
    %1473 = vmatprep.subr.mxu0 0.0
    %1474 = vmatpush2.msra.mxu0 0.0
    %1475 = vmatprep.subr.mxu0 0.0
    %1476 = vmatpush2.msra.mxu0 0.0
    %1477 = vmatprep.subr.mxu0 0.0
    %1478 = vmatpush2.msra.mxu0 0.0
    %1479 = vmatprep.subr.mxu0 0.0
    %1480 = vmatpush2.msra.mxu0 0.0
    %1481 = vmatprep.subr.mxu0 0.0
    %1482 = vmatpush2.msra.mxu0 0.0
    %1483 = vmatprep.subr.mxu0 0.0
    %1484 = vmatpush2.msra.mxu0 0.0
    %1485 = vmatprep.subr.mxu0 0.0
    %1486 = vmatpush2.msra.mxu0 0.0
    %1487 = vmatprep.mubr.f32.mxu0 0.0
    %1488 = vmatmul.mubr.f32.gmra.mxu0 %v1254
    %v1489 = vpop.f32.mrf.mxu0
    %v1490 = vadd.f32 %v1177, %v1489
    %v1491 = vpop.f32.mrf.mxu0
    %v1492 = vadd.f32 %v1179, %v1491
    %1493 = vdwg.mxu0
    %1494 = vmatprep.subr.mxu0 0.0
    %1495 = vmatpush1.msra.mxu0 0.0
    %1496 = vmatprep.subr.mxu0 0.0
    %1497 = vmatpush1.msra.mxu0 0.0
    %1498 = vmatprep.subr.mxu0 0.0
    %1499 = vmatpush1.msra.mxu0 0.0
    %1500 = vmatprep.subr.mxu0 0.0
    %1501 = vmatpush1.msra.mxu0 0.0
    %1502 = vmatprep.subr.mxu0 0.0
    %1503 = vmatpush1.msra.mxu0 0.0
    %1504 = vmatprep.subr.mxu0 0.0
    %1505 = vmatpush1.msra.mxu0 0.0
    %1506 = vmatprep.subr.mxu0 0.0
    %1507 = vmatpush1.msra.mxu0 0.0
    %1508 = vmatprep.subr.mxu0 0.0
    %1509 = vmatpush1.msra.mxu0 0.0
    %1510 = vmatprep.subr.mxu0 0.0
    %1511 = vmatpush1.msra.mxu0 0.0
    %1512 = vmatprep.subr.mxu0 0.0
    %1513 = vmatpush1.msra.mxu0 0.0
    %1514 = vmatprep.subr.mxu0 0.0
    %1515 = vmatpush1.msra.mxu0 0.0
    %1516 = vmatprep.subr.mxu0 0.0
    %1517 = vmatpush1.msra.mxu0 0.0
    %1518 = vmatprep.subr.mxu0 0.0
    %1519 = vmatpush1.msra.mxu0 0.0
    %1520 = vmatprep.subr.mxu0 0.0
    %1521 = vmatpush1.msra.mxu0 0.0
    %1522 = vmatprep.subr.mxu0 0.0
    %1523 = vmatpush1.msra.mxu0 0.0
    %1524 = vmatprep.subr.mxu0 %v1279
    %1525 = vmatpush1.msra.mxu0 %v1276
    %1526 = vmatprep.subr.mxu0 0.0
    %1527 = vmatpush2.msra.mxu0 0.0
    %1528 = vmatprep.subr.mxu0 0.0
    %1529 = vmatpush2.msra.mxu0 0.0
    %1530 = vmatprep.subr.mxu0 0.0
    %1531 = vmatpush2.msra.mxu0 0.0
    %1532 = vmatprep.subr.mxu0 0.0
    %1533 = vmatpush2.msra.mxu0 0.0
    %1534 = vmatprep.subr.mxu0 0.0
    %1535 = vmatpush2.msra.mxu0 0.0
    %1536 = vmatprep.subr.mxu0 0.0
    %1537 = vmatpush2.msra.mxu0 0.0
    %1538 = vmatprep.subr.mxu0 0.0
    %1539 = vmatpush2.msra.mxu0 0.0
    %1540 = vmatprep.subr.mxu0 0.0
    %1541 = vmatpush2.msra.mxu0 0.0
    %1542 = vmatprep.subr.mxu0 0.0
    %1543 = vmatpush2.msra.mxu0 0.0
    %1544 = vmatprep.subr.mxu0 0.0
    %1545 = vmatpush2.msra.mxu0 0.0
    %1546 = vmatprep.subr.mxu0 0.0
    %1547 = vmatpush2.msra.mxu0 0.0
    %1548 = vmatprep.subr.mxu0 0.0
    %1549 = vmatpush2.msra.mxu0 0.0
    %1550 = vmatprep.subr.mxu0 0.0
    %1551 = vmatpush2.msra.mxu0 0.0
    %1552 = vmatprep.subr.mxu0 0.0
    %1553 = vmatpush2.msra.mxu0 0.0
    %1554 = vmatprep.subr.mxu0 0.0
    %1555 = vmatpush2.msra.mxu0 0.0
    %1556 = vmatprep.subr.mxu0 0.0
    %1557 = vmatpush2.msra.mxu0 0.0
    %1558 = vmatprep.mubr.f32.mxu0 0.0
    %1559 = vmatmul.mubr.f32.gmra.mxu0 %v1254
    %v1560 = vpop.f32.mrf.mxu0
    %v1561 = vadd.f32 %v1248, %v1560
    %v1562 = vpop.f32.mrf.mxu0
    %v1563 = vadd.f32 %v1250, %v1562
    %1564 = vdwg.mxu0
    %v1565 = vxor.u32 %v1348, 2147483648
    %v1566 = vxor.u32 %v1350, 2147483648
    %v1567 = vxor.u32 %v1419, 2147483648
    %v1568 = vxor.u32 %v1421, 2147483648
    %v1569 = vxor.u32 %v1490, 2147483648
    %v1570 = vxor.u32 %v1492, 2147483648
    %v1571 = vxor.u32 %v1561, 2147483648
    %v1572 = vxor.u32 %v1563, 2147483648
    %v1573 = vmul.f32 %v1565, 1.442695
    %v1574 = vpow.pop %v1573
    %v1575 = vmul.f32 %v1566, 1.442695
    %v1576 = vpow.pop %v1575
    %v1577 = vmul.f32 %v1567, 1.442695
    %v1578 = vpow.pop %v1577
    %v1579 = vmul.f32 %v1568, 1.442695
    %v1580 = vpow.pop %v1579
    %v1581 = vmul.f32 %v1569, 1.442695
    %v1582 = vpow.pop %v1581
    %v1583 = vmul.f32 %v1570, 1.442695
    %v1584 = vpow.pop %v1583
    %v1585 = vmul.f32 %v1571, 1.442695
    %v1586 = vpow.pop %v1585
    %v1587 = vmul.f32 %v1572, 1.442695
    %v1588 = vpow.pop %v1587
    %v1589 = vadd.f32 %v1574, 1.0
    %v1590 = vadd.f32 %v1576, 1.0
    %v1591 = vadd.f32 %v1578, 1.0
    %v1592 = vadd.f32 %v1580, 1.0
    %v1593 = vadd.f32 %v1582, 1.0
    %v1594 = vadd.f32 %v1584, 1.0
    %v1595 = vadd.f32 %v1586, 1.0
    %v1596 = vadd.f32 %v1588, 1.0
    %v1597 = vrcp.pop %v1589
    %v1598 = vmul.f32 1.0, %v1597
    %v1599 = vrcp.pop %v1590
    %v1600 = vmul.f32 1.0, %v1599
    %v1601 = vrcp.pop %v1591
    %v1602 = vmul.f32 1.0, %v1601
    %v1603 = vrcp.pop %v1592
    %v1604 = vmul.f32 1.0, %v1603
    %v1605 = vrcp.pop %v1593
    %v1606 = vmul.f32 1.0, %v1605
    %v1607 = vrcp.pop %v1594
    %v1608 = vmul.f32 1.0, %v1607
    %v1609 = vrcp.pop %v1595
    %v1610 = vmul.f32 1.0, %v1609
    %v1611 = vrcp.pop %v1596
    %v1612 = vmul.f32 1.0, %v1611
    %1613 = vst [vmem:[%s9] sm:$0xff] %v1598
    %1614 = vst [vmem:[%s9 + $0x8] sm:$0xff] %v1600
    %1615 = vst [vmem:[%s9 + $0x10] sm:$0xff] %v1602
    %1616 = vst [vmem:[%s9 + $0x18] sm:$0xff] %v1604
    %1617 = vst [vmem:[%s9 + $0x20] sm:$0xff] %v1606
    %1618 = vst [vmem:[%s9 + $0x28] sm:$0xff] %v1608
    %1619 = vst [vmem:[%s9 + $0x30] sm:$0xff] %v1610
    %1620 = vst [vmem:[%s9 + $0x38] sm:$0xff] %v1612
    // Predicated region
    $region42: #{_lambda_.1} parent=1 // pred_check
      _
    $region43: #{_lambda_.1} parent=1 // pred_check_branch
      %1622 = sbr.rel (0) target = $region45
    $region44: #{_lambda_.1} parent=1 // pred_region
      _
    $region45: #{_lambda_.1} parent=1 // pred_fallthru
      _
    // Predicated region
    $region46: #{_lambda_.1} parent=1 // pred_check
      _
    $region47: #{_lambda_.1} parent=1 // pred_check_branch
      %1624 = sbr.rel (0) target = $region49
    $region48: #{_lambda_.1} parent=1 // pred_region
      %s1626 = ssub.s32 32, 32
      %1627 = vsyncadd [#allocation4], %s1626
      %s1629 = sshll.u32 [#allocation5], 4
      %s1630 = int_to_ptr.vmem [resolvable:$true] %s1629
      %1632 = dma.vmem_to_hbm [thread:$0]  %s1630, 32, %s10, [#allocation4]
    $region49: #{_lambda_.1} parent=1 // pred_fallthru
      _
    // Predicated region
    $region50: #{_lambda_.1} parent=1 // pred_check
      _
    $region51: #{_lambda_.1} parent=1 // pred_check_branch
      %1634 = sbr.rel (0) target = $region53
    $region52: #{_lambda_.1} parent=1 // pred_region
      _
    $region53: #{_lambda_.1} parent=1 // pred_fallthru
      _
    // Predicated region
    $region54: #{_lambda_.1} parent=1 // pred_check
      _
    $region55: #{_lambda_.1} parent=1 // pred_check_branch
      %1636 = sbr.rel (0) target = $region57
    $region56: #{_lambda_.1} parent=1 // pred_region
      %1637 = dma.done [#allocation4], 32
    $region57: #{_lambda_.1} parent=1 // pred_fallthru
      _
    %1638 = vsyncpa [#allocation3], 1
    %1639 = vsyncpa [#allocation4], 1

</llo_original>
